<compile_context>
chip_gen: v7x
topology: tpu7x:2x2x1
jax: 0.10.0
libtpu: 0.0.40
codegen_flags: <defaults>
</compile_context>

<pallas_src>
import jax
import jax.numpy as jnp
from jax import lax
from jax.experimental import pallas as pl
from jax.experimental.pallas import tpu as pltpu

# ---------------- configuration ----------------
SUBSEQ_LENGTH = 8
N_HEADS = 4
HIDDEN = 8
IN_FEATURES = N_HEADS * HIDDEN   # 32
NUM_GATTLAYERS = 2
ODEFC = 1
BRANCHRES = True
SUMOUT = True
BATCH = 2
EPS = 1e-5                       # torch.nn.LayerNorm default eps

# packed weight buffer (bf16), rows of width IN_FEATURES:
#   rows [i*D, (i+1)*D)                                  : gat_w[i]
#   rows [(NUM + i*ODEFC + j)*D, ... + D)                : ode_w[i, j]
W_ROWS = (NUM_GATTLAYERS + NUM_GATTLAYERS * ODEFC) * IN_FEATURES   # 128
# packed vector buffer (f32), VPL rows per layer, in order:
#   [ln_pre_g, ln_pre_b, gat_b, gat_ln_g, gat_ln_b, (ode_b, ode_ln_g, ode_ln_b) * ODEFC]
VPL = 5 + 3 * ODEFC                                                # 8
V_ROWS = NUM_GATTLAYERS * VPL                                      # 16


# ---------------- math helpers (pure jnp -> usable in-kernel and in the reference) ------
def _gelu(x):
    # tanh-approx GELU: transcendental maps to the EUP slot (free alongside VPU work).
    c = 0.7978845608028654  # sqrt(2/pi)
    return 0.5 * x * (1.0 + jnp.tanh(c * (x + 0.044715 * x * x * x)))


def _layernorm(x, g, b):
    mean = jnp.mean(x, axis=-1, keepdims=True)
    xc = x - mean
    var = jnp.mean(xc * xc, axis=-1, keepdims=True)
    return xc * lax.rsqrt(var + EPS) * g + b


# ---------------- Pallas kernel ----------------
def _vectdiffusion_kernel(x_ref, w_ref, v_ref, out_ref):
    D = IN_FEATURES
    BL = BATCH * SUBSEQ_LENGTH

    x = x_ref[...]                                   # (B*L, D) f32, whole batch
    identity = x
    out_sum = jnp.zeros_like(x)

    # per-head lane masks, built once and hoisted out of the layer loop
    lane = lax.broadcasted_iota(jnp.int32, (1, 1, D), 2)
    head_masks = [(lane >= hd * HIDDEN) & (lane < (hd + 1) * HIDDEN)
                  for hd in range(N_HEADS)]

    for i in range(NUM_GATTLAYERS):
        if BRANCHRES and i > 0:
            x = identity + x

        # one aligned (VPL, D) load holds all of this layer's 1-row parameter vectors
        vblk = v_ref[i * VPL:(i + 1) * VPL, :]
        ln_pre_g, ln_pre_b = vblk[0:1, :], vblk[1:2, :]
        gat_b, gat_ln_g, gat_ln_b = vblk[2:3, :], vblk[3:4, :], vblk[4:5, :]

        x = _layernorm(x, ln_pre_g, ln_pre_b)        # self.norm_list[i]

        # ---- pde_layer: GraphAttentionLayer, one Euler step  x <- x + gat(x) ----
        gat_w = w_ref[i * D:(i + 1) * D, :]          # bf16 (D, D), per-head W_i column-packed
        h = jnp.dot(x.astype(jnp.bfloat16), gat_w,
                    preferred_element_type=jnp.float32) + gat_b          # (B*L, D) f32
        h3 = h.reshape(BATCH, SUBSEQ_LENGTH, D)                          # (B, L, D)

        # Lane-mask every head (no minor-dim slicing -> no XLU relayout) and stack along the
        # LEADING dim so all heads/batches run through one einsum + one softmax.
        h_heads = jnp.concatenate([jnp.where(m, h3, 0.0) for m in head_masks],
                                  axis=0)                                # (H*B, L, D) f32
        hh16 = h_heads.astype(jnp.bfloat16)
        # masked full-width contraction == per-head 8-wide contraction (other lanes are 0)
        s = jnp.einsum('xld,xmd->xlm', hh16, hh16,
                       preferred_element_type=jnp.float32)               # (H*B, L, L)
        # attention * adj : adj == ones(L, L) -> elementwise no-op
        # |s| <~ 30 post-LN, exp cannot overflow in f32 -> skip max-subtraction
        e = jnp.exp(s)
        att = e / jnp.sum(e, axis=-1, keepdims=True)                     # softmax(-1)
        outh = jnp.einsum('xlm,xmd->xld', att.astype(jnp.bfloat16), hh16,
                          preferred_element_type=jnp.float32)            # (H*B, L, D)
        # heads occupy disjoint lane slices -> summing the per-head slabs is an exact
        # replacement for torch.cat(out, dim=-1); leading-dim slices are layout-free.
        gat3 = outh[0:BATCH]
        for hd in range(1, N_HEADS):
            gat3 = gat3 + outh[hd * BATCH:(hd + 1) * BATCH]              # (B, L, D)
        gat = gat3.reshape(BL, D)
        gat = _gelu(_layernorm(gat, gat_ln_g, gat_ln_b))
        x = x + gat                                   # odeint(euler, t=[0,1])[-1]

        # ---- ode_layer: ODEFunc, one Euler step  x <- x + ode(x) ----
        y = x
        for j in range(ODEFC):
            w_off = (NUM_GATTLAYERS + i * ODEFC + j) * D
            ode_w = w_ref[w_off:w_off + D, :]                            # bf16 (D, D)
            ode_b = vblk[5 + 3 * j:6 + 3 * j, :]
            ode_g = vblk[6 + 3 * j:7 + 3 * j, :]
            ode_be = vblk[7 + 3 * j:8 + 3 * j, :]
            y = jnp.dot(y.astype(jnp.bfloat16), ode_w,
                        preferred_element_type=jnp.float32) + ode_b
            y = _gelu(_layernorm(y, ode_g, ode_be))
        x = x + y

        out_sum = out_sum + x                         # opt.sumout

    out_ref[...] = (out_sum if SUMOUT else x).astype(out_ref.dtype)


def vectdiffusion(x, w_packed, v_packed):
    B, L, C = x.shape
    # Collapse the batch: one grid-less kernel invocation over a single (B*L, C) slab.
    x2 = x.reshape(B * L, C)
    flops = (2 * NUM_GATTLAYERS * (1 + ODEFC) * (B * L) * C * C          # linear layers
             + 2 * NUM_GATTLAYERS * 2 * N_HEADS * B * L * L * C)         # attention einsums
    transcendentals = NUM_GATTLAYERS * (N_HEADS * B * L * L + 2 * B * L * C)
    bytes_accessed = (x2.size * 4 * 2 + w_packed.size * 2 + v_packed.size * 4)
    out2 = pl.pallas_call(
        _vectdiffusion_kernel,
        out_shape=jax.ShapeDtypeStruct((B * L, C), x.dtype),
        in_specs=[pl.BlockSpec(memory_space=pltpu.MemorySpace.VMEM),
                  pl.BlockSpec(memory_space=pltpu.MemorySpace.VMEM),
                  pl.BlockSpec(memory_space=pltpu.MemorySpace.VMEM)],
        out_specs=pl.BlockSpec(memory_space=pltpu.MemorySpace.VMEM),
        cost_estimate=pl.CostEstimate(flops=int(flops),
                                      transcendentals=int(transcendentals),
                                      bytes_accessed=int(bytes_accessed)),
        compiler_params=pltpu.CompilerParams(vmem_limit_bytes=2 << 20),
    )(x2, w_packed, v_packed)
    return out2.reshape(B, L, C)


# ---------------- parameter init & packing ----------------
def init_params(key):
    D = IN_FEATURES
    ks = jax.random.split(key, 10)
    scale_w = float(1.0 / (D ** 0.5))

    def nrm(k, shape, scale):
        return (scale * jax.random.normal(k, shape)).astype(jnp.float32)

    ln_pre_g = (1.0 + nrm(ks[0], (NUM_GATTLAYERS, 1, D), 0.02)).astype(jnp.float32)
    ln_pre_b = nrm(ks[1], (NUM_GATTLAYERS, 1, D), 0.02)
    gat_w = nrm(ks[2], (NUM_GATTLAYERS, D, D), scale_w)              # per-head W_i, column-packed
    gat_b = nrm(ks[3], (NUM_GATTLAYERS, 1, D), 0.02)
    gat_ln_g = (1.0 + nrm(ks[4], (NUM_GATTLAYERS, 1, D), 0.02)).astype(jnp.float32)
    gat_ln_b = nrm(ks[5], (NUM_GATTLAYERS, 1, D), 0.02)
    ode_w = nrm(ks[6], (NUM_GATTLAYERS, ODEFC, D, D), scale_w)
    ode_b = nrm(ks[7], (NUM_GATTLAYERS, ODEFC, 1, D), 0.02)
    ode_ln_g = (1.0 + nrm(ks[8], (NUM_GATTLAYERS, ODEFC, 1, D), 0.02)).astype(jnp.float32)
    ode_ln_b = nrm(ks[9], (NUM_GATTLAYERS, ODEFC, 1, D), 0.02)
    return (ln_pre_g, ln_pre_b, gat_w, gat_b, gat_ln_g, gat_ln_b,
            ode_w, ode_b, ode_ln_g, ode_ln_b)


def pack_params(params):
    """Pack weights into one (W_ROWS, D) bf16 buffer and vectors into one (V_ROWS, D) f32 buffer."""
    (ln_pre_g, ln_pre_b, gat_w, gat_b, gat_ln_g, gat_ln_b,
     ode_w, ode_b, ode_ln_g, ode_ln_b) = params
    w_rows = [gat_w[i] for i in range(NUM_GATTLAYERS)]
    w_rows += [ode_w[i, j] for i in range(NUM_GATTLAYERS) for j in range(ODEFC)]
    w_packed = jnp.concatenate(w_rows, axis=0).astype(jnp.bfloat16)
    v_rows = []
    for i in range(NUM_GATTLAYERS):
        v_rows += [ln_pre_g[i], ln_pre_b[i], gat_b[i], gat_ln_g[i], gat_ln_b[i]]
        for j in range(ODEFC):
            v_rows += [ode_b[i, j], ode_ln_g[i, j], ode_ln_b[i, j]]
    v_packed = jnp.concatenate(v_rows, axis=0).astype(jnp.float32)
    assert w_packed.shape == (W_ROWS, IN_FEATURES)
    assert v_packed.shape == (V_ROWS, IN_FEATURES)
    return w_packed, v_packed


# ---------------- pure-JAX reference (same math/precision, per-head sliced form) --------
def vectdiffusion_reference(x, params):
    (ln_pre_g, ln_pre_b, gat_w, gat_b, gat_ln_g, gat_ln_b,
     ode_w, ode_b, ode_ln_g, ode_ln_b) = params
    identity = x
    out_sum = jnp.zeros_like(x)
    for i in range(NUM_GATTLAYERS):
        if BRANCHRES and i > 0:
            x = identity + x
        x = _layernorm(x, ln_pre_g[i], ln_pre_b[i])

        h = jnp.einsum('bld,de->ble', x.astype(jnp.bfloat16),
                       gat_w[i].astype(jnp.bfloat16),
                       preferred_element_type=jnp.float32) + gat_b[i]
        heads = []
        for hd in range(N_HEADS):
            hh = h[:, :, hd * HIDDEN:(hd + 1) * HIDDEN].astype(jnp.bfloat16)
            s = jnp.einsum('bld,bmd->blm', hh, hh, preferred_element_type=jnp.float32)
            e = jnp.exp(s)
            att = e / jnp.sum(e, axis=-1, keepdims=True)
            heads.append(jnp.einsum('blm,bmd->bld', att.astype(jnp.bfloat16), hh,
                                    preferred_element_type=jnp.float32))
        gat = jnp.concatenate(heads, axis=-1)
        gat = _gelu(_layernorm(gat, gat_ln_g[i], gat_ln_b[i]))
        x = x + gat

        y = x
        for j in range(ODEFC):
            y = jnp.einsum('bld,de->ble', y.astype(jnp.bfloat16),
                           ode_w[i, j].astype(jnp.bfloat16),
                           preferred_element_type=jnp.float32) + ode_b[i, j]
            y = _gelu(_layernorm(y, ode_ln_g[i, j], ode_ln_b[i, j]))
        x = x + y

        out_sum = out_sum + x
    return out_sum if SUMOUT else x


if __name__ == "__main__":
    key = jax.random.PRNGKey(0)
    kx, kp = jax.random.split(key)
    x = jax.random.normal(kx, (BATCH, SUBSEQ_LENGTH, IN_FEATURES), dtype=jnp.float32)
    params = init_params(kp)
    w_packed, v_packed = pack_params(params)

    out = vectdiffusion(x, w_packed, v_packed)
    out = jax.block_until_ready(out)

    ref = vectdiffusion_reference(x, params)
    ref = jax.block_until_ready(ref)

    assert out.shape == (BATCH, SUBSEQ_LENGTH, IN_FEATURES)
    assert jnp.allclose(out, ref, rtol=1e-2, atol=1e-2), "kernel/reference mismatch"
    print("KERNEL_OK")
</pallas_src>

<mosaic_0001>
module attributes {stable_mosaic.version = 11 : i64} {
  func.func @_vectdiffusion_kernel(%arg0: memref<16x32xf32, #tpu.memory_space<vmem>>, %arg1: memref<128x32xbf16, #tpu.memory_space<vmem>>, %arg2: memref<16x32xf32, #tpu.memory_space<vmem>>, %arg3: memref<16x32xf32, #tpu.memory_space<vmem>>) attributes {dimension_semantics = [], scalar_prefetch = 0 : i64, scratch_operands = 0 : i64, tpu.core_type = #tpu.core_type<tc>} {
    %c0 = arith.constant 0 : index
    %c0_0 = arith.constant 0 : index
    %0 = vector.load %arg0[%c0, %c0_0] : memref<16x32xf32, #tpu.memory_space<vmem>>, vector<16x32xf32>
    %cst = arith.constant 0.000000e+00 : f32
    %1 = vector.broadcast %cst : f32 to vector<16x32xf32>
    %2 = tpu.iota {dimensions = array<i32: 2>} : vector<1x1x32xi32>
    %c0_i32 = arith.constant 0 : i32
    %3 = vector.broadcast %c0_i32 : i32 to vector<1x1x32xi32>
    %4 = arith.cmpi sge, %2, %3 : vector<1x1x32xi32>
    %c8_i32 = arith.constant 8 : i32
    %5 = vector.broadcast %c8_i32 : i32 to vector<1x1x32xi32>
    %6 = arith.cmpi slt, %2, %5 : vector<1x1x32xi32>
    %7 = arith.andi %4, %6 : vector<1x1x32xi1>
    %c8_i32_1 = arith.constant 8 : i32
    %8 = vector.broadcast %c8_i32_1 : i32 to vector<1x1x32xi32>
    %9 = arith.cmpi sge, %2, %8 : vector<1x1x32xi32>
    %c16_i32 = arith.constant 16 : i32
    %10 = vector.broadcast %c16_i32 : i32 to vector<1x1x32xi32>
    %11 = arith.cmpi slt, %2, %10 : vector<1x1x32xi32>
    %12 = arith.andi %9, %11 : vector<1x1x32xi1>
    %c16_i32_2 = arith.constant 16 : i32
    %13 = vector.broadcast %c16_i32_2 : i32 to vector<1x1x32xi32>
    %14 = arith.cmpi sge, %2, %13 : vector<1x1x32xi32>
    %c24_i32 = arith.constant 24 : i32
    %15 = vector.broadcast %c24_i32 : i32 to vector<1x1x32xi32>
    %16 = arith.cmpi slt, %2, %15 : vector<1x1x32xi32>
    %17 = arith.andi %14, %16 : vector<1x1x32xi1>
    %c24_i32_3 = arith.constant 24 : i32
    %18 = vector.broadcast %c24_i32_3 : i32 to vector<1x1x32xi32>
    %19 = arith.cmpi sge, %2, %18 : vector<1x1x32xi32>
    %c32_i32 = arith.constant 32 : i32
    %20 = vector.broadcast %c32_i32 : i32 to vector<1x1x32xi32>
    %21 = arith.cmpi slt, %2, %20 : vector<1x1x32xi32>
    %22 = arith.andi %19, %21 : vector<1x1x32xi1>
    %c0_4 = arith.constant 0 : index
    %c0_5 = arith.constant 0 : index
    %23 = vector.load %arg2[%c0_4, %c0_5] : memref<16x32xf32, #tpu.memory_space<vmem>>, vector<8x32xf32>
    %24 = vector.extract_strided_slice %23 {offsets = [0, 0], sizes = [1, 32], strides = [1, 1]} : vector<8x32xf32> to vector<1x32xf32>
    %25 = vector.extract_strided_slice %23 {offsets = [1, 0], sizes = [1, 32], strides = [1, 1]} : vector<8x32xf32> to vector<1x32xf32>
    %26 = vector.extract_strided_slice %23 {offsets = [2, 0], sizes = [1, 32], strides = [1, 1]} : vector<8x32xf32> to vector<1x32xf32>
    %27 = vector.extract_strided_slice %23 {offsets = [3, 0], sizes = [1, 32], strides = [1, 1]} : vector<8x32xf32> to vector<1x32xf32>
    %28 = vector.extract_strided_slice %23 {offsets = [4, 0], sizes = [1, 32], strides = [1, 1]} : vector<8x32xf32> to vector<1x32xf32>
    %cst_6 = arith.constant dense<0.000000e+00> : vector<16xf32>
    %29 = vector.multi_reduction <add>, %0, %cst_6 [1] : vector<16x32xf32> to vector<16xf32>
    %30 = vector.shape_cast %29 : vector<16xf32> to vector<16x1xf32>
    %cst_7 = arith.constant 3.200000e+01 : f32
    %31 = vector.broadcast %cst_7 : f32 to vector<16x1xf32>
    %32 = arith.divf %30, %31 : vector<16x1xf32>
    %33 = vector.broadcast %32 : vector<16x1xf32> to vector<16x32xf32>
    %34 = arith.subf %0, %33 : vector<16x32xf32>
    %35 = arith.mulf %34, %34 : vector<16x32xf32>
    %cst_8 = arith.constant dense<0.000000e+00> : vector<16xf32>
    %36 = vector.multi_reduction <add>, %35, %cst_8 [1] : vector<16x32xf32> to vector<16xf32>
    %37 = vector.shape_cast %36 : vector<16xf32> to vector<16x1xf32>
    %cst_9 = arith.constant 3.200000e+01 : f32
    %38 = vector.broadcast %cst_9 : f32 to vector<16x1xf32>
    %39 = arith.divf %37, %38 : vector<16x1xf32>
    %cst_10 = arith.constant 9.99999974E-6 : f32
    %40 = vector.broadcast %cst_10 : f32 to vector<16x1xf32>
    %41 = arith.addf %39, %40 : vector<16x1xf32>
    %42 = math.rsqrt %41 : vector<16x1xf32>
    %43 = vector.broadcast %42 : vector<16x1xf32> to vector<16x32xf32>
    %44 = arith.mulf %34, %43 : vector<16x32xf32>
    %45 = vector.broadcast %24 : vector<1x32xf32> to vector<16x32xf32>
    %46 = arith.mulf %44, %45 : vector<16x32xf32>
    %47 = vector.broadcast %25 : vector<1x32xf32> to vector<16x32xf32>
    %48 = arith.addf %46, %47 : vector<16x32xf32>
    %c0_11 = arith.constant 0 : index
    %c0_12 = arith.constant 0 : index
    %49 = vector.load %arg1[%c0_11, %c0_12] : memref<128x32xbf16, #tpu.memory_space<vmem>>, vector<32x32xbf16>
    %50 = arith.truncf %48 : vector<16x32xf32> to vector<16x32xbf16>
    %cst_13 = arith.constant dense<0.000000e+00> : vector<16x32xf32>
    %51 = tpu.matmul %50, %49, %cst_13 {dimension_numbers = #tpu.dot_dimension_numbers<[1], [0], [0], [1], [0, 0, 1, 1], [], []>} : vector<16x32xbf16>, vector<32x32xbf16>, vector<16x32xf32> -> vector<16x32xf32>
    %52 = vector.broadcast %26 : vector<1x32xf32> to vector<16x32xf32>
    %53 = arith.addf %51, %52 : vector<16x32xf32>
    %54 = vector.shape_cast %53 : vector<16x32xf32> to vector<2x8x32xf32>
    %cst_14 = arith.constant 0.000000e+00 : f32
    %55 = vector.shape_cast %7 : vector<1x1x32xi1> to vector<1x1x32xi1>
    %56 = vector.broadcast %55 : vector<1x1x32xi1> to vector<2x8x32xi1>
    %57 = vector.broadcast %cst_14 : f32 to vector<2x8x32xf32>
    %58 = arith.select %56, %54, %57 : vector<2x8x32xi1>, vector<2x8x32xf32>
    %cst_15 = arith.constant 0.000000e+00 : f32
    %59 = vector.shape_cast %12 : vector<1x1x32xi1> to vector<1x1x32xi1>
    %60 = vector.broadcast %59 : vector<1x1x32xi1> to vector<2x8x32xi1>
    %61 = vector.broadcast %cst_15 : f32 to vector<2x8x32xf32>
    %62 = arith.select %60, %54, %61 : vector<2x8x32xi1>, vector<2x8x32xf32>
    %cst_16 = arith.constant 0.000000e+00 : f32
    %63 = vector.shape_cast %17 : vector<1x1x32xi1> to vector<1x1x32xi1>
    %64 = vector.broadcast %63 : vector<1x1x32xi1> to vector<2x8x32xi1>
    %65 = vector.broadcast %cst_16 : f32 to vector<2x8x32xf32>
    %66 = arith.select %64, %54, %65 : vector<2x8x32xi1>, vector<2x8x32xf32>
    %cst_17 = arith.constant 0.000000e+00 : f32
    %67 = vector.shape_cast %22 : vector<1x1x32xi1> to vector<1x1x32xi1>
    %68 = vector.broadcast %67 : vector<1x1x32xi1> to vector<2x8x32xi1>
    %69 = vector.broadcast %cst_17 : f32 to vector<2x8x32xf32>
    %70 = arith.select %68, %54, %69 : vector<2x8x32xi1>, vector<2x8x32xf32>
    %71 = tpu.concatenate %58, %62, %66, %70 in 0 : vector<2x8x32xf32>, vector<2x8x32xf32>, vector<2x8x32xf32>, vector<2x8x32xf32> -> vector<8x8x32xf32>
    %72 = arith.truncf %71 : vector<8x8x32xf32> to vector<8x8x32xbf16>
    "tpu.trace_start"() <{level = 10 : i32, message = "xld,xmd->xlm"}> : () -> ()
    %cst_18 = arith.constant dense<0.000000e+00> : vector<8x8x8xf32>
    %73 = tpu.matmul %72, %72, %cst_18 {dimension_numbers = #tpu.dot_dimension_numbers<[2], [2], [1], [1], [0, 0, 0, 1, 1, 1], [0], [0]>} : vector<8x8x32xbf16>, vector<8x8x32xbf16>, vector<8x8x8xf32> -> vector<8x8x8xf32>
    "tpu.trace_stop"() : () -> ()
    %74 = math.exp %73 : vector<8x8x8xf32>
    %cst_19 = arith.constant dense<0.000000e+00> : vector<8x8xf32>
    %75 = vector.multi_reduction <add>, %74, %cst_19 [2] : vector<8x8x8xf32> to vector<8x8xf32>
    %76 = vector.shape_cast %75 : vector<8x8xf32> to vector<8x8x1xf32>
    %77 = vector.broadcast %76 : vector<8x8x1xf32> to vector<8x8x8xf32>
    %78 = arith.divf %74, %77 : vector<8x8x8xf32>
    %79 = arith.truncf %78 : vector<8x8x8xf32> to vector<8x8x8xbf16>
    "tpu.trace_start"() <{level = 10 : i32, message = "xlm,xmd->xld"}> : () -> ()
    %cst_20 = arith.constant dense<0.000000e+00> : vector<8x8x32xf32>
    %80 = tpu.matmul %79, %72, %cst_20 {dimension_numbers = #tpu.dot_dimension_numbers<[2], [1], [1], [2], [0, 0, 0, 1, 1, 2], [0], [0]>} : vector<8x8x8xbf16>, vector<8x8x32xbf16>, vector<8x8x32xf32> -> vector<8x8x32xf32>
    "tpu.trace_stop"() : () -> ()
    %81 = vector.extract_strided_slice %80 {offsets = [0, 0, 0], sizes = [2, 8, 32], strides = [1, 1, 1]} : vector<8x8x32xf32> to vector<2x8x32xf32>
    %82 = vector.extract_strided_slice %80 {offsets = [2, 0, 0], sizes = [2, 8, 32], strides = [1, 1, 1]} : vector<8x8x32xf32> to vector<2x8x32xf32>
    %83 = arith.addf %81, %82 : vector<2x8x32xf32>
    %84 = vector.extract_strided_slice %80 {offsets = [4, 0, 0], sizes = [2, 8, 32], strides = [1, 1, 1]} : vector<8x8x32xf32> to vector<2x8x32xf32>
    %85 = arith.addf %83, %84 : vector<2x8x32xf32>
    %86 = vector.extract_strided_slice %80 {offsets = [6, 0, 0], sizes = [2, 8, 32], strides = [1, 1, 1]} : vector<8x8x32xf32> to vector<2x8x32xf32>
    %87 = arith.addf %85, %86 : vector<2x8x32xf32>
    %88 = vector.shape_cast %87 : vector<2x8x32xf32> to vector<16x32xf32>
    %cst_21 = arith.constant dense<0.000000e+00> : vector<16xf32>
    %89 = vector.multi_reduction <add>, %88, %cst_21 [1] : vector<16x32xf32> to vector<16xf32>
    %90 = vector.shape_cast %89 : vector<16xf32> to vector<16x1xf32>
    %cst_22 = arith.constant 3.200000e+01 : f32
    %91 = vector.broadcast %cst_22 : f32 to vector<16x1xf32>
    %92 = arith.divf %90, %91 : vector<16x1xf32>
    %93 = vector.broadcast %92 : vector<16x1xf32> to vector<16x32xf32>
    %94 = arith.subf %88, %93 : vector<16x32xf32>
    %95 = arith.mulf %94, %94 : vector<16x32xf32>
    %cst_23 = arith.constant dense<0.000000e+00> : vector<16xf32>
    %96 = vector.multi_reduction <add>, %95, %cst_23 [1] : vector<16x32xf32> to vector<16xf32>
    %97 = vector.shape_cast %96 : vector<16xf32> to vector<16x1xf32>
    %cst_24 = arith.constant 3.200000e+01 : f32
    %98 = vector.broadcast %cst_24 : f32 to vector<16x1xf32>
    %99 = arith.divf %97, %98 : vector<16x1xf32>
    %cst_25 = arith.constant 9.99999974E-6 : f32
    %100 = vector.broadcast %cst_25 : f32 to vector<16x1xf32>
    %101 = arith.addf %99, %100 : vector<16x1xf32>
    %102 = math.rsqrt %101 : vector<16x1xf32>
    %103 = vector.broadcast %102 : vector<16x1xf32> to vector<16x32xf32>
    %104 = arith.mulf %94, %103 : vector<16x32xf32>
    %105 = vector.broadcast %27 : vector<1x32xf32> to vector<16x32xf32>
    %106 = arith.mulf %104, %105 : vector<16x32xf32>
    %107 = vector.broadcast %28 : vector<1x32xf32> to vector<16x32xf32>
    %108 = arith.addf %106, %107 : vector<16x32xf32>
    %cst_26 = arith.constant 5.000000e-01 : f32
    %109 = vector.broadcast %cst_26 : f32 to vector<16x32xf32>
    %110 = arith.mulf %109, %108 : vector<16x32xf32>
    %cst_27 = arith.constant 4.471500e-02 : f32
    %111 = vector.broadcast %cst_27 : f32 to vector<16x32xf32>
    %112 = arith.mulf %111, %108 : vector<16x32xf32>
    %113 = arith.mulf %112, %108 : vector<16x32xf32>
    %114 = arith.mulf %113, %108 : vector<16x32xf32>
    %115 = arith.addf %108, %114 : vector<16x32xf32>
    %cst_28 = arith.constant 0.797884583 : f32
    %116 = vector.broadcast %cst_28 : f32 to vector<16x32xf32>
    %117 = arith.mulf %116, %115 : vector<16x32xf32>
    %118 = math.tanh %117 : vector<16x32xf32>
    %cst_29 = arith.constant 1.000000e+00 : f32
    %119 = vector.broadcast %cst_29 : f32 to vector<16x32xf32>
    %120 = arith.addf %119, %118 : vector<16x32xf32>
    %121 = arith.mulf %110, %120 : vector<16x32xf32>
    %122 = arith.addf %48, %121 : vector<16x32xf32>
    %c64 = arith.constant 64 : index
    %c0_30 = arith.constant 0 : index
    %123 = vector.load %arg1[%c64, %c0_30] : memref<128x32xbf16, #tpu.memory_space<vmem>>, vector<32x32xbf16>
    %124 = vector.extract_strided_slice %23 {offsets = [5, 0], sizes = [1, 32], strides = [1, 1]} : vector<8x32xf32> to vector<1x32xf32>
    %125 = vector.extract_strided_slice %23 {offsets = [6, 0], sizes = [1, 32], strides = [1, 1]} : vector<8x32xf32> to vector<1x32xf32>
    %126 = vector.extract_strided_slice %23 {offsets = [7, 0], sizes = [1, 32], strides = [1, 1]} : vector<8x32xf32> to vector<1x32xf32>
    %127 = arith.truncf %122 : vector<16x32xf32> to vector<16x32xbf16>
    %cst_31 = arith.constant dense<0.000000e+00> : vector<16x32xf32>
    %128 = tpu.matmul %127, %123, %cst_31 {dimension_numbers = #tpu.dot_dimension_numbers<[1], [0], [0], [1], [0, 0, 1, 1], [], []>} : vector<16x32xbf16>, vector<32x32xbf16>, vector<16x32xf32> -> vector<16x32xf32>
    %129 = vector.broadcast %124 : vector<1x32xf32> to vector<16x32xf32>
    %130 = arith.addf %128, %129 : vector<16x32xf32>
    %cst_32 = arith.constant dense<0.000000e+00> : vector<16xf32>
    %131 = vector.multi_reduction <add>, %130, %cst_32 [1] : vector<16x32xf32> to vector<16xf32>
    %132 = vector.shape_cast %131 : vector<16xf32> to vector<16x1xf32>
    %cst_33 = arith.constant 3.200000e+01 : f32
    %133 = vector.broadcast %cst_33 : f32 to vector<16x1xf32>
    %134 = arith.divf %132, %133 : vector<16x1xf32>
    %135 = vector.broadcast %134 : vector<16x1xf32> to vector<16x32xf32>
    %136 = arith.subf %130, %135 : vector<16x32xf32>
    %137 = arith.mulf %136, %136 : vector<16x32xf32>
    %cst_34 = arith.constant dense<0.000000e+00> : vector<16xf32>
    %138 = vector.multi_reduction <add>, %137, %cst_34 [1] : vector<16x32xf32> to vector<16xf32>
    %139 = vector.shape_cast %138 : vector<16xf32> to vector<16x1xf32>
    %cst_35 = arith.constant 3.200000e+01 : f32
    %140 = vector.broadcast %cst_35 : f32 to vector<16x1xf32>
    %141 = arith.divf %139, %140 : vector<16x1xf32>
    %cst_36 = arith.constant 9.99999974E-6 : f32
    %142 = vector.broadcast %cst_36 : f32 to vector<16x1xf32>
    %143 = arith.addf %141, %142 : vector<16x1xf32>
    %144 = math.rsqrt %143 : vector<16x1xf32>
    %145 = vector.broadcast %144 : vector<16x1xf32> to vector<16x32xf32>
    %146 = arith.mulf %136, %145 : vector<16x32xf32>
    %147 = vector.broadcast %125 : vector<1x32xf32> to vector<16x32xf32>
    %148 = arith.mulf %146, %147 : vector<16x32xf32>
    %149 = vector.broadcast %126 : vector<1x32xf32> to vector<16x32xf32>
    %150 = arith.addf %148, %149 : vector<16x32xf32>
    %cst_37 = arith.constant 5.000000e-01 : f32
    %151 = vector.broadcast %cst_37 : f32 to vector<16x32xf32>
    %152 = arith.mulf %151, %150 : vector<16x32xf32>
    %cst_38 = arith.constant 4.471500e-02 : f32
    %153 = vector.broadcast %cst_38 : f32 to vector<16x32xf32>
    %154 = arith.mulf %153, %150 : vector<16x32xf32>
    %155 = arith.mulf %154, %150 : vector<16x32xf32>
    %156 = arith.mulf %155, %150 : vector<16x32xf32>
    %157 = arith.addf %150, %156 : vector<16x32xf32>
    %cst_39 = arith.constant 0.797884583 : f32
    %158 = vector.broadcast %cst_39 : f32 to vector<16x32xf32>
    %159 = arith.mulf %158, %157 : vector<16x32xf32>
    %160 = math.tanh %159 : vector<16x32xf32>
    %cst_40 = arith.constant 1.000000e+00 : f32
    %161 = vector.broadcast %cst_40 : f32 to vector<16x32xf32>
    %162 = arith.addf %161, %160 : vector<16x32xf32>
    %163 = arith.mulf %152, %162 : vector<16x32xf32>
    %164 = arith.addf %122, %163 : vector<16x32xf32>
    %165 = arith.addf %1, %164 : vector<16x32xf32>
    %166 = arith.addf %0, %164 : vector<16x32xf32>
    %c8 = arith.constant 8 : index
    %c0_41 = arith.constant 0 : index
    %167 = vector.load %arg2[%c8, %c0_41] : memref<16x32xf32, #tpu.memory_space<vmem>>, vector<8x32xf32>
    %168 = vector.extract_strided_slice %167 {offsets = [0, 0], sizes = [1, 32], strides = [1, 1]} : vector<8x32xf32> to vector<1x32xf32>
    %169 = vector.extract_strided_slice %167 {offsets = [1, 0], sizes = [1, 32], strides = [1, 1]} : vector<8x32xf32> to vector<1x32xf32>
    %170 = vector.extract_strided_slice %167 {offsets = [2, 0], sizes = [1, 32], strides = [1, 1]} : vector<8x32xf32> to vector<1x32xf32>
    %171 = vector.extract_strided_slice %167 {offsets = [3, 0], sizes = [1, 32], strides = [1, 1]} : vector<8x32xf32> to vector<1x32xf32>
    %172 = vector.extract_strided_slice %167 {offsets = [4, 0], sizes = [1, 32], strides = [1, 1]} : vector<8x32xf32> to vector<1x32xf32>
    %cst_42 = arith.constant dense<0.000000e+00> : vector<16xf32>
    %173 = vector.multi_reduction <add>, %166, %cst_42 [1] : vector<16x32xf32> to vector<16xf32>
    %174 = vector.shape_cast %173 : vector<16xf32> to vector<16x1xf32>
    %cst_43 = arith.constant 3.200000e+01 : f32
    %175 = vector.broadcast %cst_43 : f32 to vector<16x1xf32>
    %176 = arith.divf %174, %175 : vector<16x1xf32>
    %177 = vector.broadcast %176 : vector<16x1xf32> to vector<16x32xf32>
    %178 = arith.subf %166, %177 : vector<16x32xf32>
    %179 = arith.mulf %178, %178 : vector<16x32xf32>
    %cst_44 = arith.constant dense<0.000000e+00> : vector<16xf32>
    %180 = vector.multi_reduction <add>, %179, %cst_44 [1] : vector<16x32xf32> to vector<16xf32>
    %181 = vector.shape_cast %180 : vector<16xf32> to vector<16x1xf32>
    %cst_45 = arith.constant 3.200000e+01 : f32
    %182 = vector.broadcast %cst_45 : f32 to vector<16x1xf32>
    %183 = arith.divf %181, %182 : vector<16x1xf32>
    %cst_46 = arith.constant 9.99999974E-6 : f32
    %184 = vector.broadcast %cst_46 : f32 to vector<16x1xf32>
    %185 = arith.addf %183, %184 : vector<16x1xf32>
    %186 = math.rsqrt %185 : vector<16x1xf32>
    %187 = vector.broadcast %186 : vector<16x1xf32> to vector<16x32xf32>
    %188 = arith.mulf %178, %187 : vector<16x32xf32>
    %189 = vector.broadcast %168 : vector<1x32xf32> to vector<16x32xf32>
    %190 = arith.mulf %188, %189 : vector<16x32xf32>
    %191 = vector.broadcast %169 : vector<1x32xf32> to vector<16x32xf32>
    %192 = arith.addf %190, %191 : vector<16x32xf32>
    %c32 = arith.constant 32 : index
    %c0_47 = arith.constant 0 : index
    %193 = vector.load %arg1[%c32, %c0_47] : memref<128x32xbf16, #tpu.memory_space<vmem>>, vector<32x32xbf16>
    %194 = arith.truncf %192 : vector<16x32xf32> to vector<16x32xbf16>
    %cst_48 = arith.constant dense<0.000000e+00> : vector<16x32xf32>
    %195 = tpu.matmul %194, %193, %cst_48 {dimension_numbers = #tpu.dot_dimension_numbers<[1], [0], [0], [1], [0, 0, 1, 1], [], []>} : vector<16x32xbf16>, vector<32x32xbf16>, vector<16x32xf32> -> vector<16x32xf32>
    %196 = vector.broadcast %170 : vector<1x32xf32> to vector<16x32xf32>
    %197 = arith.addf %195, %196 : vector<16x32xf32>
    %198 = vector.shape_cast %197 : vector<16x32xf32> to vector<2x8x32xf32>
    %cst_49 = arith.constant 0.000000e+00 : f32
    %199 = vector.shape_cast %7 : vector<1x1x32xi1> to vector<1x1x32xi1>
    %200 = vector.broadcast %199 : vector<1x1x32xi1> to vector<2x8x32xi1>
    %201 = vector.broadcast %cst_49 : f32 to vector<2x8x32xf32>
    %202 = arith.select %200, %198, %201 : vector<2x8x32xi1>, vector<2x8x32xf32>
    %cst_50 = arith.constant 0.000000e+00 : f32
    %203 = vector.shape_cast %12 : vector<1x1x32xi1> to vector<1x1x32xi1>
    %204 = vector.broadcast %203 : vector<1x1x32xi1> to vector<2x8x32xi1>
    %205 = vector.broadcast %cst_50 : f32 to vector<2x8x32xf32>
    %206 = arith.select %204, %198, %205 : vector<2x8x32xi1>, vector<2x8x32xf32>
    %cst_51 = arith.constant 0.000000e+00 : f32
    %207 = vector.shape_cast %17 : vector<1x1x32xi1> to vector<1x1x32xi1>
    %208 = vector.broadcast %207 : vector<1x1x32xi1> to vector<2x8x32xi1>
    %209 = vector.broadcast %cst_51 : f32 to vector<2x8x32xf32>
    %210 = arith.select %208, %198, %209 : vector<2x8x32xi1>, vector<2x8x32xf32>
    %cst_52 = arith.constant 0.000000e+00 : f32
    %211 = vector.shape_cast %22 : vector<1x1x32xi1> to vector<1x1x32xi1>
    %212 = vector.broadcast %211 : vector<1x1x32xi1> to vector<2x8x32xi1>
    %213 = vector.broadcast %cst_52 : f32 to vector<2x8x32xf32>
    %214 = arith.select %212, %198, %213 : vector<2x8x32xi1>, vector<2x8x32xf32>
    %215 = tpu.concatenate %202, %206, %210, %214 in 0 : vector<2x8x32xf32>, vector<2x8x32xf32>, vector<2x8x32xf32>, vector<2x8x32xf32> -> vector<8x8x32xf32>
    %216 = arith.truncf %215 : vector<8x8x32xf32> to vector<8x8x32xbf16>
    "tpu.trace_start"() <{level = 10 : i32, message = "xld,xmd->xlm"}> : () -> ()
    %cst_53 = arith.constant dense<0.000000e+00> : vector<8x8x8xf32>
    %217 = tpu.matmul %216, %216, %cst_53 {dimension_numbers = #tpu.dot_dimension_numbers<[2], [2], [1], [1], [0, 0, 0, 1, 1, 1], [0], [0]>} : vector<8x8x32xbf16>, vector<8x8x32xbf16>, vector<8x8x8xf32> -> vector<8x8x8xf32>
    "tpu.trace_stop"() : () -> ()
    %218 = math.exp %217 : vector<8x8x8xf32>
    %cst_54 = arith.constant dense<0.000000e+00> : vector<8x8xf32>
    %219 = vector.multi_reduction <add>, %218, %cst_54 [2] : vector<8x8x8xf32> to vector<8x8xf32>
    %220 = vector.shape_cast %219 : vector<8x8xf32> to vector<8x8x1xf32>
    %221 = vector.broadcast %220 : vector<8x8x1xf32> to vector<8x8x8xf32>
    %222 = arith.divf %218, %221 : vector<8x8x8xf32>
    %223 = arith.truncf %222 : vector<8x8x8xf32> to vector<8x8x8xbf16>
    "tpu.trace_start"() <{level = 10 : i32, message = "xlm,xmd->xld"}> : () -> ()
    %cst_55 = arith.constant dense<0.000000e+00> : vector<8x8x32xf32>
    %224 = tpu.matmul %223, %216, %cst_55 {dimension_numbers = #tpu.dot_dimension_numbers<[2], [1], [1], [2], [0, 0, 0, 1, 1, 2], [0], [0]>} : vector<8x8x8xbf16>, vector<8x8x32xbf16>, vector<8x8x32xf32> -> vector<8x8x32xf32>
    "tpu.trace_stop"() : () -> ()
    %225 = vector.extract_strided_slice %224 {offsets = [0, 0, 0], sizes = [2, 8, 32], strides = [1, 1, 1]} : vector<8x8x32xf32> to vector<2x8x32xf32>
    %226 = vector.extract_strided_slice %224 {offsets = [2, 0, 0], sizes = [2, 8, 32], strides = [1, 1, 1]} : vector<8x8x32xf32> to vector<2x8x32xf32>
    %227 = arith.addf %225, %226 : vector<2x8x32xf32>
    %228 = vector.extract_strided_slice %224 {offsets = [4, 0, 0], sizes = [2, 8, 32], strides = [1, 1, 1]} : vector<8x8x32xf32> to vector<2x8x32xf32>
    %229 = arith.addf %227, %228 : vector<2x8x32xf32>
    %230 = vector.extract_strided_slice %224 {offsets = [6, 0, 0], sizes = [2, 8, 32], strides = [1, 1, 1]} : vector<8x8x32xf32> to vector<2x8x32xf32>
    %231 = arith.addf %229, %230 : vector<2x8x32xf32>
    %232 = vector.shape_cast %231 : vector<2x8x32xf32> to vector<16x32xf32>
    %cst_56 = arith.constant dense<0.000000e+00> : vector<16xf32>
    %233 = vector.multi_reduction <add>, %232, %cst_56 [1] : vector<16x32xf32> to vector<16xf32>
    %234 = vector.shape_cast %233 : vector<16xf32> to vector<16x1xf32>
    %cst_57 = arith.constant 3.200000e+01 : f32
    %235 = vector.broadcast %cst_57 : f32 to vector<16x1xf32>
    %236 = arith.divf %234, %235 : vector<16x1xf32>
    %237 = vector.broadcast %236 : vector<16x1xf32> to vector<16x32xf32>
    %238 = arith.subf %232, %237 : vector<16x32xf32>
    %239 = arith.mulf %238, %238 : vector<16x32xf32>
    %cst_58 = arith.constant dense<0.000000e+00> : vector<16xf32>
    %240 = vector.multi_reduction <add>, %239, %cst_58 [1] : vector<16x32xf32> to vector<16xf32>
    %241 = vector.shape_cast %240 : vector<16xf32> to vector<16x1xf32>
    %cst_59 = arith.constant 3.200000e+01 : f32
    %242 = vector.broadcast %cst_59 : f32 to vector<16x1xf32>
    %243 = arith.divf %241, %242 : vector<16x1xf32>
    %cst_60 = arith.constant 9.99999974E-6 : f32
    %244 = vector.broadcast %cst_60 : f32 to vector<16x1xf32>
    %245 = arith.addf %243, %244 : vector<16x1xf32>
    %246 = math.rsqrt %245 : vector<16x1xf32>
    %247 = vector.broadcast %246 : vector<16x1xf32> to vector<16x32xf32>
    %248 = arith.mulf %238, %247 : vector<16x32xf32>
    %249 = vector.broadcast %171 : vector<1x32xf32> to vector<16x32xf32>
    %250 = arith.mulf %248, %249 : vector<16x32xf32>
    %251 = vector.broadcast %172 : vector<1x32xf32> to vector<16x32xf32>
    %252 = arith.addf %250, %251 : vector<16x32xf32>
    %cst_61 = arith.constant 5.000000e-01 : f32
    %253 = vector.broadcast %cst_61 : f32 to vector<16x32xf32>
    %254 = arith.mulf %253, %252 : vector<16x32xf32>
    %cst_62 = arith.constant 4.471500e-02 : f32
    %255 = vector.broadcast %cst_62 : f32 to vector<16x32xf32>
    %256 = arith.mulf %255, %252 : vector<16x32xf32>
    %257 = arith.mulf %256, %252 : vector<16x32xf32>
    %258 = arith.mulf %257, %252 : vector<16x32xf32>
    %259 = arith.addf %252, %258 : vector<16x32xf32>
    %cst_63 = arith.constant 0.797884583 : f32
    %260 = vector.broadcast %cst_63 : f32 to vector<16x32xf32>
    %261 = arith.mulf %260, %259 : vector<16x32xf32>
    %262 = math.tanh %261 : vector<16x32xf32>
    %cst_64 = arith.constant 1.000000e+00 : f32
    %263 = vector.broadcast %cst_64 : f32 to vector<16x32xf32>
    %264 = arith.addf %263, %262 : vector<16x32xf32>
    %265 = arith.mulf %254, %264 : vector<16x32xf32>
    %266 = arith.addf %192, %265 : vector<16x32xf32>
    %c96 = arith.constant 96 : index
    %c0_65 = arith.constant 0 : index
    %267 = vector.load %arg1[%c96, %c0_65] : memref<128x32xbf16, #tpu.memory_space<vmem>>, vector<32x32xbf16>
    %268 = vector.extract_strided_slice %167 {offsets = [5, 0], sizes = [1, 32], strides = [1, 1]} : vector<8x32xf32> to vector<1x32xf32>
    %269 = vector.extract_strided_slice %167 {offsets = [6, 0], sizes = [1, 32], strides = [1, 1]} : vector<8x32xf32> to vector<1x32xf32>
    %270 = vector.extract_strided_slice %167 {offsets = [7, 0], sizes = [1, 32], strides = [1, 1]} : vector<8x32xf32> to vector<1x32xf32>
    %271 = arith.truncf %266 : vector<16x32xf32> to vector<16x32xbf16>
    %cst_66 = arith.constant dense<0.000000e+00> : vector<16x32xf32>
    %272 = tpu.matmul %271, %267, %cst_66 {dimension_numbers = #tpu.dot_dimension_numbers<[1], [0], [0], [1], [0, 0, 1, 1], [], []>} : vector<16x32xbf16>, vector<32x32xbf16>, vector<16x32xf32> -> vector<16x32xf32>
    %273 = vector.broadcast %268 : vector<1x32xf32> to vector<16x32xf32>
    %274 = arith.addf %272, %273 : vector<16x32xf32>
    %cst_67 = arith.constant dense<0.000000e+00> : vector<16xf32>
    %275 = vector.multi_reduction <add>, %274, %cst_67 [1] : vector<16x32xf32> to vector<16xf32>
    %276 = vector.shape_cast %275 : vector<16xf32> to vector<16x1xf32>
    %cst_68 = arith.constant 3.200000e+01 : f32
    %277 = vector.broadcast %cst_68 : f32 to vector<16x1xf32>
    %278 = arith.divf %276, %277 : vector<16x1xf32>
    %279 = vector.broadcast %278 : vector<16x1xf32> to vector<16x32xf32>
    %280 = arith.subf %274, %279 : vector<16x32xf32>
    %281 = arith.mulf %280, %280 : vector<16x32xf32>
    %cst_69 = arith.constant dense<0.000000e+00> : vector<16xf32>
    %282 = vector.multi_reduction <add>, %281, %cst_69 [1] : vector<16x32xf32> to vector<16xf32>
    %283 = vector.shape_cast %282 : vector<16xf32> to vector<16x1xf32>
    %cst_70 = arith.constant 3.200000e+01 : f32
    %284 = vector.broadcast %cst_70 : f32 to vector<16x1xf32>
    %285 = arith.divf %283, %284 : vector<16x1xf32>
    %cst_71 = arith.constant 9.99999974E-6 : f32
    %286 = vector.broadcast %cst_71 : f32 to vector<16x1xf32>
    %287 = arith.addf %285, %286 : vector<16x1xf32>
    %288 = math.rsqrt %287 : vector<16x1xf32>
    %289 = vector.broadcast %288 : vector<16x1xf32> to vector<16x32xf32>
    %290 = arith.mulf %280, %289 : vector<16x32xf32>
    %291 = vector.broadcast %269 : vector<1x32xf32> to vector<16x32xf32>
    %292 = arith.mulf %290, %291 : vector<16x32xf32>
    %293 = vector.broadcast %270 : vector<1x32xf32> to vector<16x32xf32>
    %294 = arith.addf %292, %293 : vector<16x32xf32>
    %cst_72 = arith.constant 5.000000e-01 : f32
    %295 = vector.broadcast %cst_72 : f32 to vector<16x32xf32>
    %296 = arith.mulf %295, %294 : vector<16x32xf32>
    %cst_73 = arith.constant 4.471500e-02 : f32
    %297 = vector.broadcast %cst_73 : f32 to vector<16x32xf32>
    %298 = arith.mulf %297, %294 : vector<16x32xf32>
    %299 = arith.mulf %298, %294 : vector<16x32xf32>
    %300 = arith.mulf %299, %294 : vector<16x32xf32>
    %301 = arith.addf %294, %300 : vector<16x32xf32>
    %cst_74 = arith.constant 0.797884583 : f32
    %302 = vector.broadcast %cst_74 : f32 to vector<16x32xf32>
    %303 = arith.mulf %302, %301 : vector<16x32xf32>
    %304 = math.tanh %303 : vector<16x32xf32>
    %cst_75 = arith.constant 1.000000e+00 : f32
    %305 = vector.broadcast %cst_75 : f32 to vector<16x32xf32>
    %306 = arith.addf %305, %304 : vector<16x32xf32>
    %307 = arith.mulf %296, %306 : vector<16x32xf32>
    %308 = arith.addf %266, %307 : vector<16x32xf32>
    %309 = arith.addf %165, %308 : vector<16x32xf32>
    %c0_76 = arith.constant 0 : index
    %c0_77 = arith.constant 0 : index
    %310 = vector.load %arg3[%c0_76, %c0_77] : memref<16x32xf32, #tpu.memory_space<vmem>>, vector<16x32xf32>
    tpu.vector_store %arg3[%c0_76, %c0_77], %309 {strides = array<i32>} : memref<16x32xf32, #tpu.memory_space<vmem>>, vector<16x32xf32>,
    return
  }
}

</mosaic_0001>

<llo_original>
// kernel: tpu_custom_call.1
$region0: #{tpu_custom_call.1}
  #allocation0 [shape = 'u32[]', space=smem, size = 0x4, offset = 0x4, fixed_abs, tag = 'smem constant byte address 0x4 - core index']
  #allocation1 [shape = 'u32[144,128]{1,0:T(1,128)}', space=vmem, size = 0x12000, scoped, tag = 'internal scratch']
  %s0 = inlined_call_operand.vmem [shape: f32[16,32], index: 0, kind: input, shape index: {}]
  %s1 = inlined_call_operand.vmem [shape: bf16[128,32], index: 1, kind: input, shape index: {}]
  %s2 = inlined_call_operand.vmem [shape: f32[16,32], index: 2, kind: input, shape index: {}]
  %s3 = inlined_call_operand.hbm [shape: f32[16,32], index: 3, kind: output, shape index: {}]
  %s4 = sld [smem:[#allocation0]]
  $region22: #{tpu_custom_call.1} parent=0
    _
  %s6 = ssub.s32 1, %s4
  %s7 = scalar_select 0, %s6, %s4
  $region1: #{tpu_custom_call.1} parent=0
    #allocation2 [shape = 'u8[8192]{0}', space=vmem, size = 0x2000, scoped, tag = 'output window, operand 0, single buffered']
    #allocation3 [shape = 's32[1]{0}', space=sflag, size = 0x4, scoped, tag = 'scoped memory for tpu_custom_call.1']
    %8 = vsyncpa [#allocation3], 0
    // Predicated region
    $region2: #{tpu_custom_call.1} parent=1 // pred_check
      _
    $region3: #{tpu_custom_call.1} parent=1 // pred_check_branch
      %10 = sbr.rel (0) target = $region5
    $region4: #{tpu_custom_call.1} parent=1 // pred_region
      _
    $region5: #{tpu_custom_call.1} parent=1 // pred_fallthru
      _
    // Predicated region
    $region6: #{tpu_custom_call.1} parent=1 // pred_check
      _
    $region7: #{tpu_custom_call.1} parent=1 // pred_check_branch
      %12 = sbr.rel (0) target = $region9
    $region8: #{tpu_custom_call.1} parent=1 // pred_region
      _
    $region9: #{tpu_custom_call.1} parent=1 // pred_fallthru
      _
    // Predicated region
    $region10: #{tpu_custom_call.1} parent=1 // pred_check
      _
    $region11: #{tpu_custom_call.1} parent=1 // pred_check_branch
      %14 = sbr.rel (0) target = $region13
    $region12: #{tpu_custom_call.1} parent=1 // pred_region
      _
    $region13: #{tpu_custom_call.1} parent=1 // pred_fallthru
      _
    %v16 = vld [vmem:[%s0] sm:$0xff]
    %v17 = vld [vmem:[%s0 + $0x8] sm:$0xff]
    %v18 = vlaneseq
    %v19 = vand.u32 %v18, 127
    %vm20 = vcmp.ge.s32.totalorder %v19, 0
    %vm21 = vcmp.lt.s32.totalorder %v19, 8
    %vm22 = vmand %vm20, %vm21
    %vm23 = vcmp.ge.s32.totalorder %v19, 8
    %vm24 = vcmp.lt.s32.totalorder %v19, 16
    %vm25 = vmand %vm23, %vm24
    %vm26 = vcmp.ge.s32.totalorder %v19, 16
    %vm27 = vcmp.lt.s32.totalorder %v19, 24
    %vm28 = vmand %vm26, %vm27
    %vm29 = vcmp.ge.s32.totalorder %v19, 24
    %vm30 = vcmp.lt.s32.totalorder %v19, 32
    %vm31 = vmand %vm29, %vm30
    %v32 = vld [vmem:[%s2] sm:$0xff]
    %vm33 = vcmask 261120
    %v34 = vsel %vm33, %v16, 0.0
    %35 = vadd.xlane.f32.xlu0 %v34
    %v36 = vpop.xlane.xlu0 %35
    %v37 = vsel %vm33, %v17, 0.0
    %38 = vadd.xlane.f32.xlu0 %v37
    %v39 = vpop.xlane.xlu0 %38
    %v40 = vrcp.pop 32.0
    %v41 = vmul.f32 %v36, %v40
    %v42 = vmul.f32 %v39, %v40
    %v43 = vsub.f32 %v16, %v41
    %v44 = vsub.f32 %v17, %v42
    %v45 = vmul.f32 %v43, %v43
    %v46 = vmul.f32 %v44, %v44
    %v47 = vsel %vm33, %v45, 0.0
    %48 = vadd.xlane.f32.xlu0 %v47
    %v49 = vpop.xlane.xlu0 %48
    %v50 = vsel %vm33, %v46, 0.0
    %51 = vadd.xlane.f32.xlu0 %v50
    %v52 = vpop.xlane.xlu0 %51
    %v53 = vmul.f32 %v49, %v40
    %v54 = vmul.f32 %v52, %v40
    %v55 = vadd.f32 %v53, 1e-05
    %v56 = vadd.f32 %v54, 1e-05
    %v57 = vrsqrt.pop %v55
    %v58 = vrsqrt.pop %v56
    %v59 = vmul.f32 %v43, %v57
    %v60 = vmul.f32 %v44, %v58
    %v61 = vlaneseq
    %v62 = vshrl.u32 %v61, 7
    %v63 = vsub.s32 0, %v62
    %v64 = vrot.slane %v32, %v63
    %v65 = vmul.f32 %v59, %v64
    %v66 = vmul.f32 %v60, %v64
    %v67 = vlaneseq
    %v68 = vshrl.u32 %v67, 7
    %v69 = vsub.s32 1, %v68
    %v70 = vrot.slane %v32, %v69
    %v71 = vadd.f32 %v65, %v70
    %v72 = vadd.f32 %v66, %v70
    %v73 = vld [vmem:[%s1] sm:$0xf]
    %v74 = vld [vmem:[%s1 + $0x4] sm:$0xf]
    %v75 = vld [vmem:[%s1 + $0x8] sm:$0xf]
    %v76 = vld [vmem:[%s1 + $0xc] sm:$0xf]
    %v77 = vpack.c.bf16 %v72, %v71
    %v78 = vlaneseq
    %v79 = vshrl.u32 %v78, 7
    %v80 = vsub.s32 2, %v79
    %v81 = vrot.slane %v32, %v80
    %v86 = vunpack.c.l.b16 %v73
    %v87 = vunpack.c.l.b16 %v74
    %v88 = vunpack.c.l.b16 %v75
    %v89 = vunpack.c.l.b16 %v76
    %v90 = vpack.c.b16 %v87, %v86
    %v91 = vpack.c.b16 %v89, %v88
    %v95 = vsel %vm33, %v77, 0
    %97 = vmatprep.subr.bf16.mxu0 0
    %98 = vmatpush1.bf16.msra.mxu0 %v90
    %99 = vmatprep.subr.bf16.mxu0 0
    %100 = vmatpush1.bf16.msra.mxu0 %v91
    %101 = vmatprep.subr.bf16.mxu0 0
    %102 = vmatpush1.bf16.msra.mxu0 0
    %103 = vmatprep.subr.bf16.mxu0 0
    %104 = vmatpush1.bf16.msra.mxu0 0
    %105 = vmatprep.subr.bf16.mxu0 0
    %106 = vmatpush1.bf16.msra.mxu0 0
    %107 = vmatprep.subr.bf16.mxu0 0
    %108 = vmatpush1.bf16.msra.mxu0 0
    %109 = vmatprep.subr.bf16.mxu0 0
    %110 = vmatpush1.bf16.msra.mxu0 0
    %111 = vmatprep.subr.bf16.mxu0 0
    %112 = vmatpush1.bf16.msra.mxu0 0
    %113 = vmatprep.subr.bf16.mxu0 0
    %114 = vmatpush1.bf16.msra.mxu0 0
    %115 = vmatprep.subr.bf16.mxu0 0
    %116 = vmatpush1.bf16.msra.mxu0 0
    %117 = vmatprep.subr.bf16.mxu0 0
    %118 = vmatpush1.bf16.msra.mxu0 0
    %119 = vmatprep.subr.bf16.mxu0 0
    %120 = vmatpush1.bf16.msra.mxu0 0
    %121 = vmatprep.subr.bf16.mxu0 0
    %122 = vmatpush1.bf16.msra.mxu0 0
    %123 = vmatprep.subr.bf16.mxu0 0
    %124 = vmatpush1.bf16.msra.mxu0 0
    %125 = vmatprep.subr.bf16.mxu0 0
    %126 = vmatpush1.bf16.msra.mxu0 0
    %127 = vmatprep.subr.bf16.mxu0 0
    %128 = vmatpush1.bf16.msra.mxu0 0
    %129 = vmatprep.mubr.bf16.mxu0 0
    %130 = vmatmul.mubr.bf16.gmra.mrb[0].mxu0 %v95
    %v131 = vpop.f32.mrb[0].mxu0
    %v132 = vadd.f32 %v81, %v131
    %v133 = vpop.f32.mrb[0].mxu0
    %v134 = vpop.f32.mrb[0].mxu0
    %v135 = vadd.f32 %v81, %v134
    %v136 = vpop.f32.mrb[0].mxu0
    %137 = vdwg.mxu0
    %v138 = vsel %vm22, 1, 0
    %vm139 = vcmp.eq.s32.totalorder %v138, 1
    %v140 = vsel %vm139, %v132, 0.0
    %v141 = vsel %vm139, %v135, 0.0
    %v142 = vsel %vm25, 1, 0
    %vm143 = vcmp.eq.s32.totalorder %v142, 1
    %v144 = vsel %vm143, %v132, 0.0
    %v145 = vsel %vm143, %v135, 0.0
    %v146 = vsel %vm28, 1, 0
    %vm147 = vcmp.eq.s32.totalorder %v146, 1
    %v148 = vsel %vm147, %v132, 0.0
    %v149 = vsel %vm147, %v135, 0.0
    %v150 = vsel %vm31, 1, 0
    %vm151 = vcmp.eq.s32.totalorder %v150, 1
    %v152 = vsel %vm151, %v132, 0.0
    %v153 = vsel %vm151, %v135, 0.0
    %v154 = vpack.c.bf16 %v140, %v140
    %v155 = vpack.c.bf16 %v141, %v141
    %v156 = vpack.c.bf16 %v144, %v144
    %v157 = vpack.c.bf16 %v145, %v145
    %v158 = vpack.c.bf16 %v148, %v148
    %v159 = vpack.c.bf16 %v149, %v149
    %v160 = vpack.c.bf16 %v152, %v152
    %v161 = vpack.c.bf16 %v153, %v153
    %v163 = vsel %vm33, %v154, 0
    %165 = vmatprep.subr.bf16.mxu0 0
    %166 = vmatpush1.bf16.xpose.msra.mxu0 %v163
    %167 = vmatprep.subr.bf16.mxu0 0
    %168 = vmatpush1.bf16.xpose.msra.mxu0 0
    %169 = vmatprep.subr.bf16.mxu0 0
    %170 = vmatpush1.bf16.xpose.msra.mxu0 0
    %171 = vmatprep.subr.bf16.mxu0 0
    %172 = vmatpush1.bf16.xpose.msra.mxu0 0
    %173 = vmatprep.subr.bf16.mxu0 0
    %174 = vmatpush1.bf16.xpose.msra.mxu0 0
    %175 = vmatprep.subr.bf16.mxu0 0
    %176 = vmatpush1.bf16.xpose.msra.mxu0 0
    %177 = vmatprep.subr.bf16.mxu0 0
    %178 = vmatpush1.bf16.xpose.msra.mxu0 0
    %179 = vmatprep.subr.bf16.mxu0 0
    %180 = vmatpush1.bf16.xpose.msra.mxu0 0
    %181 = vmatprep.subr.bf16.mxu0 0
    %182 = vmatpush1.bf16.xpose.msra.mxu0 0
    %183 = vmatprep.subr.bf16.mxu0 0
    %184 = vmatpush1.bf16.xpose.msra.mxu0 0
    %185 = vmatprep.subr.bf16.mxu0 0
    %186 = vmatpush1.bf16.xpose.msra.mxu0 0
    %187 = vmatprep.subr.bf16.mxu0 0
    %188 = vmatpush1.bf16.xpose.msra.mxu0 0
    %189 = vmatprep.subr.bf16.mxu0 0
    %190 = vmatpush1.bf16.xpose.msra.mxu0 0
    %191 = vmatprep.subr.bf16.mxu0 0
    %192 = vmatpush1.bf16.xpose.msra.mxu0 0
    %193 = vmatprep.subr.bf16.mxu0 0
    %194 = vmatpush1.bf16.xpose.msra.mxu0 0
    %195 = vmatprep.subr.bf16.mxu0 0
    %196 = vmatpush1.bf16.xpose.msra.mxu0 0
    %197 = vmatprep.mubr.bf16.mxu0 0
    %198 = vmatmul.mubr.bf16.gmra.mrb[0].mxu0 %v163
    %v199 = vpop.f32.mrb[0].mxu0
    %v200 = vadd.f32 0.0, %v199
    %v201 = vpop.f32.mrb[0].mxu0
    %v202 = vpop.f32.mrb[0].mxu0
    %v203 = vpop.f32.mrb[0].mxu0
    %204 = vdwg.mxu0
    %v206 = vsel %vm33, %v155, 0
    %208 = vmatprep.subr.bf16.mxu0 0
    %209 = vmatpush1.bf16.xpose.msra.mxu0 %v206
    %210 = vmatprep.subr.bf16.mxu0 0
    %211 = vmatpush1.bf16.xpose.msra.mxu0 0
    %212 = vmatprep.subr.bf16.mxu0 0
    %213 = vmatpush1.bf16.xpose.msra.mxu0 0
    %214 = vmatprep.subr.bf16.mxu0 0
    %215 = vmatpush1.bf16.xpose.msra.mxu0 0
    %216 = vmatprep.subr.bf16.mxu0 0
    %217 = vmatpush1.bf16.xpose.msra.mxu0 0
    %218 = vmatprep.subr.bf16.mxu0 0
    %219 = vmatpush1.bf16.xpose.msra.mxu0 0
    %220 = vmatprep.subr.bf16.mxu0 0
    %221 = vmatpush1.bf16.xpose.msra.mxu0 0
    %222 = vmatprep.subr.bf16.mxu0 0
    %223 = vmatpush1.bf16.xpose.msra.mxu0 0
    %224 = vmatprep.subr.bf16.mxu0 0
    %225 = vmatpush1.bf16.xpose.msra.mxu0 0
    %226 = vmatprep.subr.bf16.mxu0 0
    %227 = vmatpush1.bf16.xpose.msra.mxu0 0
    %228 = vmatprep.subr.bf16.mxu0 0
    %229 = vmatpush1.bf16.xpose.msra.mxu0 0
    %230 = vmatprep.subr.bf16.mxu0 0
    %231 = vmatpush1.bf16.xpose.msra.mxu0 0
    %232 = vmatprep.subr.bf16.mxu0 0
    %233 = vmatpush1.bf16.xpose.msra.mxu0 0
    %234 = vmatprep.subr.bf16.mxu0 0
    %235 = vmatpush1.bf16.xpose.msra.mxu0 0
    %236 = vmatprep.subr.bf16.mxu0 0
    %237 = vmatpush1.bf16.xpose.msra.mxu0 0
    %238 = vmatprep.subr.bf16.mxu0 0
    %239 = vmatpush1.bf16.xpose.msra.mxu0 0
    %240 = vmatprep.mubr.bf16.mxu0 0
    %241 = vmatmul.mubr.bf16.gmra.mrb[0].mxu0 %v206
    %v242 = vpop.f32.mrb[0].mxu0
    %v243 = vadd.f32 0.0, %v242
    %v244 = vpop.f32.mrb[0].mxu0
    %v245 = vpop.f32.mrb[0].mxu0
    %v246 = vpop.f32.mrb[0].mxu0
    %247 = vdwg.mxu0
    %v249 = vsel %vm33, %v156, 0
    %251 = vmatprep.subr.bf16.mxu0 0
    %252 = vmatpush1.bf16.xpose.msra.mxu0 %v249
    %253 = vmatprep.subr.bf16.mxu0 0
    %254 = vmatpush1.bf16.xpose.msra.mxu0 0
    %255 = vmatprep.subr.bf16.mxu0 0
    %256 = vmatpush1.bf16.xpose.msra.mxu0 0
    %257 = vmatprep.subr.bf16.mxu0 0
    %258 = vmatpush1.bf16.xpose.msra.mxu0 0
    %259 = vmatprep.subr.bf16.mxu0 0
    %260 = vmatpush1.bf16.xpose.msra.mxu0 0
    %261 = vmatprep.subr.bf16.mxu0 0
    %262 = vmatpush1.bf16.xpose.msra.mxu0 0
    %263 = vmatprep.subr.bf16.mxu0 0
    %264 = vmatpush1.bf16.xpose.msra.mxu0 0
    %265 = vmatprep.subr.bf16.mxu0 0
    %266 = vmatpush1.bf16.xpose.msra.mxu0 0
    %267 = vmatprep.subr.bf16.mxu0 0
    %268 = vmatpush1.bf16.xpose.msra.mxu0 0
    %269 = vmatprep.subr.bf16.mxu0 0
    %270 = vmatpush1.bf16.xpose.msra.mxu0 0
    %271 = vmatprep.subr.bf16.mxu0 0
    %272 = vmatpush1.bf16.xpose.msra.mxu0 0
    %273 = vmatprep.subr.bf16.mxu0 0
    %274 = vmatpush1.bf16.xpose.msra.mxu0 0
    %275 = vmatprep.subr.bf16.mxu0 0
    %276 = vmatpush1.bf16.xpose.msra.mxu0 0
    %277 = vmatprep.subr.bf16.mxu0 0
    %278 = vmatpush1.bf16.xpose.msra.mxu0 0
    %279 = vmatprep.subr.bf16.mxu0 0
    %280 = vmatpush1.bf16.xpose.msra.mxu0 0
    %281 = vmatprep.subr.bf16.mxu0 0
    %282 = vmatpush1.bf16.xpose.msra.mxu0 0
    %283 = vmatprep.mubr.bf16.mxu0 0
    %284 = vmatmul.mubr.bf16.gmra.mrb[0].mxu0 %v249
    %v285 = vpop.f32.mrb[0].mxu0
    %v286 = vadd.f32 0.0, %v285
    %v287 = vpop.f32.mrb[0].mxu0
    %v288 = vpop.f32.mrb[0].mxu0
    %v289 = vpop.f32.mrb[0].mxu0
    %290 = vdwg.mxu0
    %v292 = vsel %vm33, %v157, 0
    %294 = vmatprep.subr.bf16.mxu0 0
    %295 = vmatpush1.bf16.xpose.msra.mxu0 %v292
    %296 = vmatprep.subr.bf16.mxu0 0
    %297 = vmatpush1.bf16.xpose.msra.mxu0 0
    %298 = vmatprep.subr.bf16.mxu0 0
    %299 = vmatpush1.bf16.xpose.msra.mxu0 0
    %300 = vmatprep.subr.bf16.mxu0 0
    %301 = vmatpush1.bf16.xpose.msra.mxu0 0
    %302 = vmatprep.subr.bf16.mxu0 0
    %303 = vmatpush1.bf16.xpose.msra.mxu0 0
    %304 = vmatprep.subr.bf16.mxu0 0
    %305 = vmatpush1.bf16.xpose.msra.mxu0 0
    %306 = vmatprep.subr.bf16.mxu0 0
    %307 = vmatpush1.bf16.xpose.msra.mxu0 0
    %308 = vmatprep.subr.bf16.mxu0 0
    %309 = vmatpush1.bf16.xpose.msra.mxu0 0
    %310 = vmatprep.subr.bf16.mxu0 0
    %311 = vmatpush1.bf16.xpose.msra.mxu0 0
    %312 = vmatprep.subr.bf16.mxu0 0
    %313 = vmatpush1.bf16.xpose.msra.mxu0 0
    %314 = vmatprep.subr.bf16.mxu0 0
    %315 = vmatpush1.bf16.xpose.msra.mxu0 0
    %316 = vmatprep.subr.bf16.mxu0 0
    %317 = vmatpush1.bf16.xpose.msra.mxu0 0
    %318 = vmatprep.subr.bf16.mxu0 0
    %319 = vmatpush1.bf16.xpose.msra.mxu0 0
    %320 = vmatprep.subr.bf16.mxu0 0
    %321 = vmatpush1.bf16.xpose.msra.mxu0 0
    %322 = vmatprep.subr.bf16.mxu0 0
    %323 = vmatpush1.bf16.xpose.msra.mxu0 0
    %324 = vmatprep.subr.bf16.mxu0 0
    %325 = vmatpush1.bf16.xpose.msra.mxu0 0
    %326 = vmatprep.mubr.bf16.mxu0 0
    %327 = vmatmul.mubr.bf16.gmra.mrb[0].mxu0 %v292
    %v328 = vpop.f32.mrb[0].mxu0
    %v329 = vadd.f32 0.0, %v328
    %v330 = vpop.f32.mrb[0].mxu0
    %v331 = vpop.f32.mrb[0].mxu0
    %v332 = vpop.f32.mrb[0].mxu0
    %333 = vdwg.mxu0
    %v335 = vsel %vm33, %v158, 0
    %337 = vmatprep.subr.bf16.mxu0 0
    %338 = vmatpush1.bf16.xpose.msra.mxu0 %v335
    %339 = vmatprep.subr.bf16.mxu0 0
    %340 = vmatpush1.bf16.xpose.msra.mxu0 0
    %341 = vmatprep.subr.bf16.mxu0 0
    %342 = vmatpush1.bf16.xpose.msra.mxu0 0
    %343 = vmatprep.subr.bf16.mxu0 0
    %344 = vmatpush1.bf16.xpose.msra.mxu0 0
    %345 = vmatprep.subr.bf16.mxu0 0
    %346 = vmatpush1.bf16.xpose.msra.mxu0 0
    %347 = vmatprep.subr.bf16.mxu0 0
    %348 = vmatpush1.bf16.xpose.msra.mxu0 0
    %349 = vmatprep.subr.bf16.mxu0 0
    %350 = vmatpush1.bf16.xpose.msra.mxu0 0
    %351 = vmatprep.subr.bf16.mxu0 0
    %352 = vmatpush1.bf16.xpose.msra.mxu0 0
    %353 = vmatprep.subr.bf16.mxu0 0
    %354 = vmatpush1.bf16.xpose.msra.mxu0 0
    %355 = vmatprep.subr.bf16.mxu0 0
    %356 = vmatpush1.bf16.xpose.msra.mxu0 0
    %357 = vmatprep.subr.bf16.mxu0 0
    %358 = vmatpush1.bf16.xpose.msra.mxu0 0
    %359 = vmatprep.subr.bf16.mxu0 0
    %360 = vmatpush1.bf16.xpose.msra.mxu0 0
    %361 = vmatprep.subr.bf16.mxu0 0
    %362 = vmatpush1.bf16.xpose.msra.mxu0 0
    %363 = vmatprep.subr.bf16.mxu0 0
    %364 = vmatpush1.bf16.xpose.msra.mxu0 0
    %365 = vmatprep.subr.bf16.mxu0 0
    %366 = vmatpush1.bf16.xpose.msra.mxu0 0
    %367 = vmatprep.subr.bf16.mxu0 0
    %368 = vmatpush1.bf16.xpose.msra.mxu0 0
    %369 = vmatprep.mubr.bf16.mxu0 0
    %370 = vmatmul.mubr.bf16.gmra.mrb[0].mxu0 %v335
    %v371 = vpop.f32.mrb[0].mxu0
    %v372 = vadd.f32 0.0, %v371
    %v373 = vpop.f32.mrb[0].mxu0
    %v374 = vpop.f32.mrb[0].mxu0
    %v375 = vpop.f32.mrb[0].mxu0
    %376 = vdwg.mxu0
    %v378 = vsel %vm33, %v159, 0
    %380 = vmatprep.subr.bf16.mxu0 0
    %381 = vmatpush1.bf16.xpose.msra.mxu0 %v378
    %382 = vmatprep.subr.bf16.mxu0 0
    %383 = vmatpush1.bf16.xpose.msra.mxu0 0
    %384 = vmatprep.subr.bf16.mxu0 0
    %385 = vmatpush1.bf16.xpose.msra.mxu0 0
    %386 = vmatprep.subr.bf16.mxu0 0
    %387 = vmatpush1.bf16.xpose.msra.mxu0 0
    %388 = vmatprep.subr.bf16.mxu0 0
    %389 = vmatpush1.bf16.xpose.msra.mxu0 0
    %390 = vmatprep.subr.bf16.mxu0 0
    %391 = vmatpush1.bf16.xpose.msra.mxu0 0
    %392 = vmatprep.subr.bf16.mxu0 0
    %393 = vmatpush1.bf16.xpose.msra.mxu0 0
    %394 = vmatprep.subr.bf16.mxu0 0
    %395 = vmatpush1.bf16.xpose.msra.mxu0 0
    %396 = vmatprep.subr.bf16.mxu0 0
    %397 = vmatpush1.bf16.xpose.msra.mxu0 0
    %398 = vmatprep.subr.bf16.mxu0 0
    %399 = vmatpush1.bf16.xpose.msra.mxu0 0
    %400 = vmatprep.subr.bf16.mxu0 0
    %401 = vmatpush1.bf16.xpose.msra.mxu0 0
    %402 = vmatprep.subr.bf16.mxu0 0
    %403 = vmatpush1.bf16.xpose.msra.mxu0 0
    %404 = vmatprep.subr.bf16.mxu0 0
    %405 = vmatpush1.bf16.xpose.msra.mxu0 0
    %406 = vmatprep.subr.bf16.mxu0 0
    %407 = vmatpush1.bf16.xpose.msra.mxu0 0
    %408 = vmatprep.subr.bf16.mxu0 0
    %409 = vmatpush1.bf16.xpose.msra.mxu0 0
    %410 = vmatprep.subr.bf16.mxu0 0
    %411 = vmatpush1.bf16.xpose.msra.mxu0 0
    %412 = vmatprep.mubr.bf16.mxu0 0
    %413 = vmatmul.mubr.bf16.gmra.mrb[0].mxu0 %v378
    %v414 = vpop.f32.mrb[0].mxu0
    %v415 = vadd.f32 0.0, %v414
    %v416 = vpop.f32.mrb[0].mxu0
    %v417 = vpop.f32.mrb[0].mxu0
    %v418 = vpop.f32.mrb[0].mxu0
    %419 = vdwg.mxu0
    %v421 = vsel %vm33, %v160, 0
    %423 = vmatprep.subr.bf16.mxu0 0
    %424 = vmatpush1.bf16.xpose.msra.mxu0 %v421
    %425 = vmatprep.subr.bf16.mxu0 0
    %426 = vmatpush1.bf16.xpose.msra.mxu0 0
    %427 = vmatprep.subr.bf16.mxu0 0
    %428 = vmatpush1.bf16.xpose.msra.mxu0 0
    %429 = vmatprep.subr.bf16.mxu0 0
    %430 = vmatpush1.bf16.xpose.msra.mxu0 0
    %431 = vmatprep.subr.bf16.mxu0 0
    %432 = vmatpush1.bf16.xpose.msra.mxu0 0
    %433 = vmatprep.subr.bf16.mxu0 0
    %434 = vmatpush1.bf16.xpose.msra.mxu0 0
    %435 = vmatprep.subr.bf16.mxu0 0
    %436 = vmatpush1.bf16.xpose.msra.mxu0 0
    %437 = vmatprep.subr.bf16.mxu0 0
    %438 = vmatpush1.bf16.xpose.msra.mxu0 0
    %439 = vmatprep.subr.bf16.mxu0 0
    %440 = vmatpush1.bf16.xpose.msra.mxu0 0
    %441 = vmatprep.subr.bf16.mxu0 0
    %442 = vmatpush1.bf16.xpose.msra.mxu0 0
    %443 = vmatprep.subr.bf16.mxu0 0
    %444 = vmatpush1.bf16.xpose.msra.mxu0 0
    %445 = vmatprep.subr.bf16.mxu0 0
    %446 = vmatpush1.bf16.xpose.msra.mxu0 0
    %447 = vmatprep.subr.bf16.mxu0 0
    %448 = vmatpush1.bf16.xpose.msra.mxu0 0
    %449 = vmatprep.subr.bf16.mxu0 0
    %450 = vmatpush1.bf16.xpose.msra.mxu0 0
    %451 = vmatprep.subr.bf16.mxu0 0
    %452 = vmatpush1.bf16.xpose.msra.mxu0 0
    %453 = vmatprep.subr.bf16.mxu0 0
    %454 = vmatpush1.bf16.xpose.msra.mxu0 0
    %455 = vmatprep.mubr.bf16.mxu0 0
    %456 = vmatmul.mubr.bf16.gmra.mrb[0].mxu0 %v421
    %v457 = vpop.f32.mrb[0].mxu0
    %v458 = vadd.f32 0.0, %v457
    %v459 = vpop.f32.mrb[0].mxu0
    %v460 = vpop.f32.mrb[0].mxu0
    %v461 = vpop.f32.mrb[0].mxu0
    %462 = vdwg.mxu0
    %v464 = vsel %vm33, %v161, 0
    %466 = vmatprep.subr.bf16.mxu0 0
    %467 = vmatpush1.bf16.xpose.msra.mxu0 %v464
    %468 = vmatprep.subr.bf16.mxu0 0
    %469 = vmatpush1.bf16.xpose.msra.mxu0 0
    %470 = vmatprep.subr.bf16.mxu0 0
    %471 = vmatpush1.bf16.xpose.msra.mxu0 0
    %472 = vmatprep.subr.bf16.mxu0 0
    %473 = vmatpush1.bf16.xpose.msra.mxu0 0
    %474 = vmatprep.subr.bf16.mxu0 0
    %475 = vmatpush1.bf16.xpose.msra.mxu0 0
    %476 = vmatprep.subr.bf16.mxu0 0
    %477 = vmatpush1.bf16.xpose.msra.mxu0 0
    %478 = vmatprep.subr.bf16.mxu0 0
    %479 = vmatpush1.bf16.xpose.msra.mxu0 0
    %480 = vmatprep.subr.bf16.mxu0 0
    %481 = vmatpush1.bf16.xpose.msra.mxu0 0
    %482 = vmatprep.subr.bf16.mxu0 0
    %483 = vmatpush1.bf16.xpose.msra.mxu0 0
    %484 = vmatprep.subr.bf16.mxu0 0
    %485 = vmatpush1.bf16.xpose.msra.mxu0 0
    %486 = vmatprep.subr.bf16.mxu0 0
    %487 = vmatpush1.bf16.xpose.msra.mxu0 0
    %488 = vmatprep.subr.bf16.mxu0 0
    %489 = vmatpush1.bf16.xpose.msra.mxu0 0
    %490 = vmatprep.subr.bf16.mxu0 0
    %491 = vmatpush1.bf16.xpose.msra.mxu0 0
    %492 = vmatprep.subr.bf16.mxu0 0
    %493 = vmatpush1.bf16.xpose.msra.mxu0 0
    %494 = vmatprep.subr.bf16.mxu0 0
    %495 = vmatpush1.bf16.xpose.msra.mxu0 0
    %496 = vmatprep.subr.bf16.mxu0 0
    %497 = vmatpush1.bf16.xpose.msra.mxu0 0
    %498 = vmatprep.mubr.bf16.mxu0 0
    %499 = vmatmul.mubr.bf16.gmra.mrb[0].mxu0 %v464
    %v500 = vpop.f32.mrb[0].mxu0
    %v501 = vadd.f32 0.0, %v500
    %v502 = vpop.f32.mrb[0].mxu0
    %v503 = vpop.f32.mrb[0].mxu0
    %v504 = vpop.f32.mrb[0].mxu0
    %505 = vdwg.mxu0
    %v506 = vmul.f32 %v200, 1.442695
    %v507 = vpow.pop %v506
    %v508 = vmul.f32 %v243, 1.442695
    %v509 = vpow.pop %v508
    %v510 = vmul.f32 %v286, 1.442695
    %v511 = vpow.pop %v510
    %v512 = vmul.f32 %v329, 1.442695
    %v513 = vpow.pop %v512
    %v514 = vmul.f32 %v372, 1.442695
    %v515 = vpow.pop %v514
    %v516 = vmul.f32 %v415, 1.442695
    %v517 = vpow.pop %v516
    %v518 = vmul.f32 %v458, 1.442695
    %v519 = vpow.pop %v518
    %v520 = vmul.f32 %v501, 1.442695
    %v521 = vpow.pop %v520
    %vm522 = vcmask 64512
    %v523 = vsel %vm522, %v507, 0.0
    %524 = vadd.xlane.f32.xlu0 %v523
    %v525 = vpop.xlane.xlu0 %524
    %v526 = vsel %vm522, %v509, 0.0
    %527 = vadd.xlane.f32.xlu0 %v526
    %v528 = vpop.xlane.xlu0 %527
    %v529 = vsel %vm522, %v511, 0.0
    %530 = vadd.xlane.f32.xlu0 %v529
    %v531 = vpop.xlane.xlu0 %530
    %v532 = vsel %vm522, %v513, 0.0
    %533 = vadd.xlane.f32.xlu0 %v532
    %v534 = vpop.xlane.xlu0 %533
    %v535 = vsel %vm522, %v515, 0.0
    %536 = vadd.xlane.f32.xlu0 %v535
    %v537 = vpop.xlane.xlu0 %536
    %v538 = vsel %vm522, %v517, 0.0
    %539 = vadd.xlane.f32.xlu0 %v538
    %v540 = vpop.xlane.xlu0 %539
    %v541 = vsel %vm522, %v519, 0.0
    %542 = vadd.xlane.f32.xlu0 %v541
    %v543 = vpop.xlane.xlu0 %542
    %v544 = vsel %vm522, %v521, 0.0
    %545 = vadd.xlane.f32.xlu0 %v544
    %v546 = vpop.xlane.xlu0 %545
    %v547 = vrcp.pop %v525
    %v548 = vmul.f32 %v507, %v547
    %v549 = vrcp.pop %v528
    %v550 = vmul.f32 %v509, %v549
    %v551 = vrcp.pop %v531
    %v552 = vmul.f32 %v511, %v551
    %v553 = vrcp.pop %v534
    %v554 = vmul.f32 %v513, %v553
    %v555 = vrcp.pop %v537
    %v556 = vmul.f32 %v515, %v555
    %v557 = vrcp.pop %v540
    %v558 = vmul.f32 %v517, %v557
    %v559 = vrcp.pop %v543
    %v560 = vmul.f32 %v519, %v559
    %v561 = vrcp.pop %v546
    %v562 = vmul.f32 %v521, %v561
    %v563 = vpack.c.bf16 %v548, %v548
    %v564 = vpack.c.bf16 %v550, %v550
    %v565 = vpack.c.bf16 %v552, %v552
    %v566 = vpack.c.bf16 %v554, %v554
    %v567 = vpack.c.bf16 %v556, %v556
    %v568 = vpack.c.bf16 %v558, %v558
    %v569 = vpack.c.bf16 %v560, %v560
    %v570 = vpack.c.bf16 %v562, %v562
    %v572 = vsel %vm522, %v563, 0
    %vm574 = vcmask 1043456
    %v575 = vsel %vm574, %v154, 0
    %577 = vmatprep.subr.bf16.mxu0 0
    %578 = vmatpush1.bf16.msra.mxu0 %v575
    %579 = vmatprep.subr.bf16.mxu0 0
    %580 = vmatpush1.bf16.msra.mxu0 0
    %581 = vmatprep.subr.bf16.mxu0 0
    %582 = vmatpush1.bf16.msra.mxu0 0
    %583 = vmatprep.subr.bf16.mxu0 0
    %584 = vmatpush1.bf16.msra.mxu0 0
    %585 = vmatprep.subr.bf16.mxu0 0
    %586 = vmatpush1.bf16.msra.mxu0 0
    %587 = vmatprep.subr.bf16.mxu0 0
    %588 = vmatpush1.bf16.msra.mxu0 0
    %589 = vmatprep.subr.bf16.mxu0 0
    %590 = vmatpush1.bf16.msra.mxu0 0
    %591 = vmatprep.subr.bf16.mxu0 0
    %592 = vmatpush1.bf16.msra.mxu0 0
    %593 = vmatprep.subr.bf16.mxu0 0
    %594 = vmatpush1.bf16.msra.mxu0 0
    %595 = vmatprep.subr.bf16.mxu0 0
    %596 = vmatpush1.bf16.msra.mxu0 0
    %597 = vmatprep.subr.bf16.mxu0 0
    %598 = vmatpush1.bf16.msra.mxu0 0
    %599 = vmatprep.subr.bf16.mxu0 0
    %600 = vmatpush1.bf16.msra.mxu0 0
    %601 = vmatprep.subr.bf16.mxu0 0
    %602 = vmatpush1.bf16.msra.mxu0 0
    %603 = vmatprep.subr.bf16.mxu0 0
    %604 = vmatpush1.bf16.msra.mxu0 0
    %605 = vmatprep.subr.bf16.mxu0 0
    %606 = vmatpush1.bf16.msra.mxu0 0
    %607 = vmatprep.subr.bf16.mxu0 0
    %608 = vmatpush1.bf16.msra.mxu0 0
    %609 = vmatprep.mubr.bf16.mxu0 0
    %610 = vmatmul.mubr.bf16.gmra.mrb[0].mxu0 %v572
    %v611 = vpop.f32.mrb[0].mxu0
    %v612 = vadd.f32 0.0, %v611
    %v613 = vpop.f32.mrb[0].mxu0
    %v614 = vpop.f32.mrb[0].mxu0
    %v615 = vpop.f32.mrb[0].mxu0
    %616 = vdwg.mxu0
    %v618 = vsel %vm522, %v564, 0
    %v620 = vsel %vm574, %v155, 0
    %622 = vmatprep.subr.bf16.mxu0 0
    %623 = vmatpush1.bf16.msra.mxu0 %v620
    %624 = vmatprep.subr.bf16.mxu0 0
    %625 = vmatpush1.bf16.msra.mxu0 0
    %626 = vmatprep.subr.bf16.mxu0 0
    %627 = vmatpush1.bf16.msra.mxu0 0
    %628 = vmatprep.subr.bf16.mxu0 0
    %629 = vmatpush1.bf16.msra.mxu0 0
    %630 = vmatprep.subr.bf16.mxu0 0
    %631 = vmatpush1.bf16.msra.mxu0 0
    %632 = vmatprep.subr.bf16.mxu0 0
    %633 = vmatpush1.bf16.msra.mxu0 0
    %634 = vmatprep.subr.bf16.mxu0 0
    %635 = vmatpush1.bf16.msra.mxu0 0
    %636 = vmatprep.subr.bf16.mxu0 0
    %637 = vmatpush1.bf16.msra.mxu0 0
    %638 = vmatprep.subr.bf16.mxu0 0
    %639 = vmatpush1.bf16.msra.mxu0 0
    %640 = vmatprep.subr.bf16.mxu0 0
    %641 = vmatpush1.bf16.msra.mxu0 0
    %642 = vmatprep.subr.bf16.mxu0 0
    %643 = vmatpush1.bf16.msra.mxu0 0
    %644 = vmatprep.subr.bf16.mxu0 0
    %645 = vmatpush1.bf16.msra.mxu0 0
    %646 = vmatprep.subr.bf16.mxu0 0
    %647 = vmatpush1.bf16.msra.mxu0 0
    %648 = vmatprep.subr.bf16.mxu0 0
    %649 = vmatpush1.bf16.msra.mxu0 0
    %650 = vmatprep.subr.bf16.mxu0 0
    %651 = vmatpush1.bf16.msra.mxu0 0
    %652 = vmatprep.subr.bf16.mxu0 0
    %653 = vmatpush1.bf16.msra.mxu0 0
    %654 = vmatprep.mubr.bf16.mxu0 0
    %655 = vmatmul.mubr.bf16.gmra.mrb[0].mxu0 %v618
    %v656 = vpop.f32.mrb[0].mxu0
    %v657 = vadd.f32 0.0, %v656
    %v658 = vpop.f32.mrb[0].mxu0
    %v659 = vpop.f32.mrb[0].mxu0
    %v660 = vpop.f32.mrb[0].mxu0
    %661 = vdwg.mxu0
    %v663 = vsel %vm522, %v565, 0
    %v665 = vsel %vm574, %v156, 0
    %667 = vmatprep.subr.bf16.mxu0 0
    %668 = vmatpush1.bf16.msra.mxu0 %v665
    %669 = vmatprep.subr.bf16.mxu0 0
    %670 = vmatpush1.bf16.msra.mxu0 0
    %671 = vmatprep.subr.bf16.mxu0 0
    %672 = vmatpush1.bf16.msra.mxu0 0
    %673 = vmatprep.subr.bf16.mxu0 0
    %674 = vmatpush1.bf16.msra.mxu0 0
    %675 = vmatprep.subr.bf16.mxu0 0
    %676 = vmatpush1.bf16.msra.mxu0 0
    %677 = vmatprep.subr.bf16.mxu0 0
    %678 = vmatpush1.bf16.msra.mxu0 0
    %679 = vmatprep.subr.bf16.mxu0 0
    %680 = vmatpush1.bf16.msra.mxu0 0
    %681 = vmatprep.subr.bf16.mxu0 0
    %682 = vmatpush1.bf16.msra.mxu0 0
    %683 = vmatprep.subr.bf16.mxu0 0
    %684 = vmatpush1.bf16.msra.mxu0 0
    %685 = vmatprep.subr.bf16.mxu0 0
    %686 = vmatpush1.bf16.msra.mxu0 0
    %687 = vmatprep.subr.bf16.mxu0 0
    %688 = vmatpush1.bf16.msra.mxu0 0
    %689 = vmatprep.subr.bf16.mxu0 0
    %690 = vmatpush1.bf16.msra.mxu0 0
    %691 = vmatprep.subr.bf16.mxu0 0
    %692 = vmatpush1.bf16.msra.mxu0 0
    %693 = vmatprep.subr.bf16.mxu0 0
    %694 = vmatpush1.bf16.msra.mxu0 0
    %695 = vmatprep.subr.bf16.mxu0 0
    %696 = vmatpush1.bf16.msra.mxu0 0
    %697 = vmatprep.subr.bf16.mxu0 0
    %698 = vmatpush1.bf16.msra.mxu0 0
    %699 = vmatprep.mubr.bf16.mxu0 0
    %700 = vmatmul.mubr.bf16.gmra.mrb[0].mxu0 %v663
    %v701 = vpop.f32.mrb[0].mxu0
    %v702 = vadd.f32 0.0, %v701
    %v703 = vpop.f32.mrb[0].mxu0
    %v704 = vpop.f32.mrb[0].mxu0
    %v705 = vpop.f32.mrb[0].mxu0
    %706 = vdwg.mxu0
    %v708 = vsel %vm522, %v566, 0
    %v710 = vsel %vm574, %v157, 0
    %712 = vmatprep.subr.bf16.mxu0 0
    %713 = vmatpush1.bf16.msra.mxu0 %v710
    %714 = vmatprep.subr.bf16.mxu0 0
    %715 = vmatpush1.bf16.msra.mxu0 0
    %716 = vmatprep.subr.bf16.mxu0 0
    %717 = vmatpush1.bf16.msra.mxu0 0
    %718 = vmatprep.subr.bf16.mxu0 0
    %719 = vmatpush1.bf16.msra.mxu0 0
    %720 = vmatprep.subr.bf16.mxu0 0
    %721 = vmatpush1.bf16.msra.mxu0 0
    %722 = vmatprep.subr.bf16.mxu0 0
    %723 = vmatpush1.bf16.msra.mxu0 0
    %724 = vmatprep.subr.bf16.mxu0 0
    %725 = vmatpush1.bf16.msra.mxu0 0
    %726 = vmatprep.subr.bf16.mxu0 0
    %727 = vmatpush1.bf16.msra.mxu0 0
    %728 = vmatprep.subr.bf16.mxu0 0
    %729 = vmatpush1.bf16.msra.mxu0 0
    %730 = vmatprep.subr.bf16.mxu0 0
    %731 = vmatpush1.bf16.msra.mxu0 0
    %732 = vmatprep.subr.bf16.mxu0 0
    %733 = vmatpush1.bf16.msra.mxu0 0
    %734 = vmatprep.subr.bf16.mxu0 0
    %735 = vmatpush1.bf16.msra.mxu0 0
    %736 = vmatprep.subr.bf16.mxu0 0
    %737 = vmatpush1.bf16.msra.mxu0 0
    %738 = vmatprep.subr.bf16.mxu0 0
    %739 = vmatpush1.bf16.msra.mxu0 0
    %740 = vmatprep.subr.bf16.mxu0 0
    %741 = vmatpush1.bf16.msra.mxu0 0
    %742 = vmatprep.subr.bf16.mxu0 0
    %743 = vmatpush1.bf16.msra.mxu0 0
    %744 = vmatprep.mubr.bf16.mxu0 0
    %745 = vmatmul.mubr.bf16.gmra.mrb[0].mxu0 %v708
    %v746 = vpop.f32.mrb[0].mxu0
    %v747 = vadd.f32 0.0, %v746
    %v748 = vpop.f32.mrb[0].mxu0
    %v749 = vpop.f32.mrb[0].mxu0
    %v750 = vpop.f32.mrb[0].mxu0
    %751 = vdwg.mxu0
    %v753 = vsel %vm522, %v567, 0
    %v755 = vsel %vm574, %v158, 0
    %757 = vmatprep.subr.bf16.mxu0 0
    %758 = vmatpush1.bf16.msra.mxu0 %v755
    %759 = vmatprep.subr.bf16.mxu0 0
    %760 = vmatpush1.bf16.msra.mxu0 0
    %761 = vmatprep.subr.bf16.mxu0 0
    %762 = vmatpush1.bf16.msra.mxu0 0
    %763 = vmatprep.subr.bf16.mxu0 0
    %764 = vmatpush1.bf16.msra.mxu0 0
    %765 = vmatprep.subr.bf16.mxu0 0
    %766 = vmatpush1.bf16.msra.mxu0 0
    %767 = vmatprep.subr.bf16.mxu0 0
    %768 = vmatpush1.bf16.msra.mxu0 0
    %769 = vmatprep.subr.bf16.mxu0 0
    %770 = vmatpush1.bf16.msra.mxu0 0
    %771 = vmatprep.subr.bf16.mxu0 0
    %772 = vmatpush1.bf16.msra.mxu0 0
    %773 = vmatprep.subr.bf16.mxu0 0
    %774 = vmatpush1.bf16.msra.mxu0 0
    %775 = vmatprep.subr.bf16.mxu0 0
    %776 = vmatpush1.bf16.msra.mxu0 0
    %777 = vmatprep.subr.bf16.mxu0 0
    %778 = vmatpush1.bf16.msra.mxu0 0
    %779 = vmatprep.subr.bf16.mxu0 0
    %780 = vmatpush1.bf16.msra.mxu0 0
    %781 = vmatprep.subr.bf16.mxu0 0
    %782 = vmatpush1.bf16.msra.mxu0 0
    %783 = vmatprep.subr.bf16.mxu0 0
    %784 = vmatpush1.bf16.msra.mxu0 0
    %785 = vmatprep.subr.bf16.mxu0 0
    %786 = vmatpush1.bf16.msra.mxu0 0
    %787 = vmatprep.subr.bf16.mxu0 0
    %788 = vmatpush1.bf16.msra.mxu0 0
    %789 = vmatprep.mubr.bf16.mxu0 0
    %790 = vmatmul.mubr.bf16.gmra.mrb[0].mxu0 %v753
    %v791 = vpop.f32.mrb[0].mxu0
    %v792 = vadd.f32 0.0, %v791
    %v793 = vpop.f32.mrb[0].mxu0
    %v794 = vpop.f32.mrb[0].mxu0
    %v795 = vpop.f32.mrb[0].mxu0
    %796 = vdwg.mxu0
    %v798 = vsel %vm522, %v568, 0
    %v800 = vsel %vm574, %v159, 0
    %802 = vmatprep.subr.bf16.mxu0 0
    %803 = vmatpush1.bf16.msra.mxu0 %v800
    %804 = vmatprep.subr.bf16.mxu0 0
    %805 = vmatpush1.bf16.msra.mxu0 0
    %806 = vmatprep.subr.bf16.mxu0 0
    %807 = vmatpush1.bf16.msra.mxu0 0
    %808 = vmatprep.subr.bf16.mxu0 0
    %809 = vmatpush1.bf16.msra.mxu0 0
    %810 = vmatprep.subr.bf16.mxu0 0
    %811 = vmatpush1.bf16.msra.mxu0 0
    %812 = vmatprep.subr.bf16.mxu0 0
    %813 = vmatpush1.bf16.msra.mxu0 0
    %814 = vmatprep.subr.bf16.mxu0 0
    %815 = vmatpush1.bf16.msra.mxu0 0
    %816 = vmatprep.subr.bf16.mxu0 0
    %817 = vmatpush1.bf16.msra.mxu0 0
    %818 = vmatprep.subr.bf16.mxu0 0
    %819 = vmatpush1.bf16.msra.mxu0 0
    %820 = vmatprep.subr.bf16.mxu0 0
    %821 = vmatpush1.bf16.msra.mxu0 0
    %822 = vmatprep.subr.bf16.mxu0 0
    %823 = vmatpush1.bf16.msra.mxu0 0
    %824 = vmatprep.subr.bf16.mxu0 0
    %825 = vmatpush1.bf16.msra.mxu0 0
    %826 = vmatprep.subr.bf16.mxu0 0
    %827 = vmatpush1.bf16.msra.mxu0 0
    %828 = vmatprep.subr.bf16.mxu0 0
    %829 = vmatpush1.bf16.msra.mxu0 0
    %830 = vmatprep.subr.bf16.mxu0 0
    %831 = vmatpush1.bf16.msra.mxu0 0
    %832 = vmatprep.subr.bf16.mxu0 0
    %833 = vmatpush1.bf16.msra.mxu0 0
    %834 = vmatprep.mubr.bf16.mxu0 0
    %835 = vmatmul.mubr.bf16.gmra.mrb[0].mxu0 %v798
    %v836 = vpop.f32.mrb[0].mxu0
    %v837 = vadd.f32 0.0, %v836
    %v838 = vpop.f32.mrb[0].mxu0
    %v839 = vpop.f32.mrb[0].mxu0
    %v840 = vpop.f32.mrb[0].mxu0
    %841 = vdwg.mxu0
    %v843 = vsel %vm522, %v569, 0
    %v845 = vsel %vm574, %v160, 0
    %847 = vmatprep.subr.bf16.mxu0 0
    %848 = vmatpush1.bf16.msra.mxu0 %v845
    %849 = vmatprep.subr.bf16.mxu0 0
    %850 = vmatpush1.bf16.msra.mxu0 0
    %851 = vmatprep.subr.bf16.mxu0 0
    %852 = vmatpush1.bf16.msra.mxu0 0
    %853 = vmatprep.subr.bf16.mxu0 0
    %854 = vmatpush1.bf16.msra.mxu0 0
    %855 = vmatprep.subr.bf16.mxu0 0
    %856 = vmatpush1.bf16.msra.mxu0 0
    %857 = vmatprep.subr.bf16.mxu0 0
    %858 = vmatpush1.bf16.msra.mxu0 0
    %859 = vmatprep.subr.bf16.mxu0 0
    %860 = vmatpush1.bf16.msra.mxu0 0
    %861 = vmatprep.subr.bf16.mxu0 0
    %862 = vmatpush1.bf16.msra.mxu0 0
    %863 = vmatprep.subr.bf16.mxu0 0
    %864 = vmatpush1.bf16.msra.mxu0 0
    %865 = vmatprep.subr.bf16.mxu0 0
    %866 = vmatpush1.bf16.msra.mxu0 0
    %867 = vmatprep.subr.bf16.mxu0 0
    %868 = vmatpush1.bf16.msra.mxu0 0
    %869 = vmatprep.subr.bf16.mxu0 0
    %870 = vmatpush1.bf16.msra.mxu0 0
    %871 = vmatprep.subr.bf16.mxu0 0
    %872 = vmatpush1.bf16.msra.mxu0 0
    %873 = vmatprep.subr.bf16.mxu0 0
    %874 = vmatpush1.bf16.msra.mxu0 0
    %875 = vmatprep.subr.bf16.mxu0 0
    %876 = vmatpush1.bf16.msra.mxu0 0
    %877 = vmatprep.subr.bf16.mxu0 0
    %878 = vmatpush1.bf16.msra.mxu0 0
    %879 = vmatprep.mubr.bf16.mxu0 0
    %880 = vmatmul.mubr.bf16.gmra.mrb[0].mxu0 %v843
    %v881 = vpop.f32.mrb[0].mxu0
    %v882 = vadd.f32 0.0, %v881
    %v883 = vpop.f32.mrb[0].mxu0
    %v884 = vpop.f32.mrb[0].mxu0
    %v885 = vpop.f32.mrb[0].mxu0
    %886 = vdwg.mxu0
    %v888 = vsel %vm522, %v570, 0
    %v890 = vsel %vm574, %v161, 0
    %892 = vmatprep.subr.bf16.mxu0 0
    %893 = vmatpush1.bf16.msra.mxu0 %v890
    %894 = vmatprep.subr.bf16.mxu0 0
    %895 = vmatpush1.bf16.msra.mxu0 0
    %896 = vmatprep.subr.bf16.mxu0 0
    %897 = vmatpush1.bf16.msra.mxu0 0
    %898 = vmatprep.subr.bf16.mxu0 0
    %899 = vmatpush1.bf16.msra.mxu0 0
    %900 = vmatprep.subr.bf16.mxu0 0
    %901 = vmatpush1.bf16.msra.mxu0 0
    %902 = vmatprep.subr.bf16.mxu0 0
    %903 = vmatpush1.bf16.msra.mxu0 0
    %904 = vmatprep.subr.bf16.mxu0 0
    %905 = vmatpush1.bf16.msra.mxu0 0
    %906 = vmatprep.subr.bf16.mxu0 0
    %907 = vmatpush1.bf16.msra.mxu0 0
    %908 = vmatprep.subr.bf16.mxu0 0
    %909 = vmatpush1.bf16.msra.mxu0 0
    %910 = vmatprep.subr.bf16.mxu0 0
    %911 = vmatpush1.bf16.msra.mxu0 0
    %912 = vmatprep.subr.bf16.mxu0 0
    %913 = vmatpush1.bf16.msra.mxu0 0
    %914 = vmatprep.subr.bf16.mxu0 0
    %915 = vmatpush1.bf16.msra.mxu0 0
    %916 = vmatprep.subr.bf16.mxu0 0
    %917 = vmatpush1.bf16.msra.mxu0 0
    %918 = vmatprep.subr.bf16.mxu0 0
    %919 = vmatpush1.bf16.msra.mxu0 0
    %920 = vmatprep.subr.bf16.mxu0 0
    %921 = vmatpush1.bf16.msra.mxu0 0
    %922 = vmatprep.subr.bf16.mxu0 0
    %923 = vmatpush1.bf16.msra.mxu0 0
    %924 = vmatprep.mubr.bf16.mxu0 0
    %925 = vmatmul.mubr.bf16.gmra.mrb[0].mxu0 %v888
    %v926 = vpop.f32.mrb[0].mxu0
    %v927 = vadd.f32 0.0, %v926
    %v928 = vpop.f32.mrb[0].mxu0
    %v929 = vpop.f32.mrb[0].mxu0
    %v930 = vpop.f32.mrb[0].mxu0
    %931 = vdwg.mxu0
    %v932 = vadd.f32 %v612, %v702
    %v933 = vadd.f32 %v657, %v747
    %v934 = vadd.f32 %v932, %v792
    %v935 = vadd.f32 %v933, %v837
    %v936 = vadd.f32 %v934, %v882
    %v937 = vadd.f32 %v935, %v927
    %v938 = vsel %vm33, %v936, 0.0
    %939 = vadd.xlane.f32.xlu0 %v938
    %v940 = vpop.xlane.xlu0 %939
    %v941 = vsel %vm33, %v937, 0.0
    %942 = vadd.xlane.f32.xlu0 %v941
    %v943 = vpop.xlane.xlu0 %942
    %v944 = vmul.f32 %v940, %v40
    %v945 = vmul.f32 %v943, %v40
    %v946 = vsub.f32 %v936, %v944
    %v947 = vsub.f32 %v937, %v945
    %v948 = vmul.f32 %v946, %v946
    %v949 = vmul.f32 %v947, %v947
    %v950 = vsel %vm33, %v948, 0.0
    %951 = vadd.xlane.f32.xlu0 %v950
    %v952 = vpop.xlane.xlu0 %951
    %v953 = vsel %vm33, %v949, 0.0
    %954 = vadd.xlane.f32.xlu0 %v953
    %v955 = vpop.xlane.xlu0 %954
    %v956 = vmul.f32 %v952, %v40
    %v957 = vmul.f32 %v955, %v40
    %v958 = vadd.f32 %v956, 1e-05
    %v959 = vadd.f32 %v957, 1e-05
    %v960 = vrsqrt.pop %v958
    %v961 = vrsqrt.pop %v959
    %v962 = vmul.f32 %v946, %v960
    %v963 = vmul.f32 %v947, %v961
    %v964 = vlaneseq
    %v965 = vshrl.u32 %v964, 7
    %v966 = vsub.s32 3, %v965
    %v967 = vrot.slane %v32, %v966
    %v968 = vmul.f32 %v962, %v967
    %v969 = vmul.f32 %v963, %v967
    %v970 = vlaneseq
    %v971 = vshrl.u32 %v970, 7
    %v972 = vsub.s32 4, %v971
    %v973 = vrot.slane %v32, %v972
    %v974 = vadd.f32 %v968, %v973
    %v975 = vadd.f32 %v969, %v973
    %v976 = vmul.f32 %v974, 0.5
    %v977 = vmul.f32 %v975, 0.5
    %v978 = vmul.f32 %v974, 0.044715
    %v979 = vmul.f32 %v975, 0.044715
    %v980 = vmul.f32 %v978, %v974
    %v981 = vmul.f32 %v979, %v975
    %v982 = vmul.f32 %v980, %v974
    %v983 = vmul.f32 %v981, %v975
    %v984 = vadd.f32 %v974, %v982
    %v985 = vadd.f32 %v975, %v983
    %v986 = vmul.f32 %v984, 0.7978846
    %v987 = vmul.f32 %v985, 0.7978846
    %v988 = vtanh.pop %v986
    %v989 = vtanh.pop %v987
    %v990 = vadd.f32 %v988, 1.0
    %v991 = vadd.f32 %v989, 1.0
    %v992 = vmul.f32 %v976, %v990
    %v993 = vmul.f32 %v977, %v991
    %v994 = vadd.f32 %v71, %v992
    %v995 = vadd.f32 %v72, %v993
    %v996 = vld [vmem:[%s1 + $0x20] sm:$0xf]
    %v997 = vld [vmem:[%s1 + $0x24] sm:$0xf]
    %v998 = vld [vmem:[%s1 + $0x28] sm:$0xf]
    %v999 = vld [vmem:[%s1 + $0x2c] sm:$0xf]
    %v1000 = vpack.c.bf16 %v995, %v994
    %v1001 = vlaneseq
    %v1002 = vshrl.u32 %v1001, 7
    %v1003 = vsub.s32 5, %v1002
    %v1004 = vrot.slane %v32, %v1003
    %v1009 = vunpack.c.l.b16 %v996
    %v1010 = vunpack.c.l.b16 %v997
    %v1011 = vunpack.c.l.b16 %v998
    %v1012 = vunpack.c.l.b16 %v999
    %v1013 = vpack.c.b16 %v1010, %v1009
    %v1014 = vpack.c.b16 %v1012, %v1011
    %v1018 = vsel %vm33, %v1000, 0
    %1020 = vmatprep.subr.bf16.mxu0 0
    %1021 = vmatpush1.bf16.msra.mxu0 %v1013
    %1022 = vmatprep.subr.bf16.mxu0 0
    %1023 = vmatpush1.bf16.msra.mxu0 %v1014
    %1024 = vmatprep.subr.bf16.mxu0 0
    %1025 = vmatpush1.bf16.msra.mxu0 0
    %1026 = vmatprep.subr.bf16.mxu0 0
    %1027 = vmatpush1.bf16.msra.mxu0 0
    %1028 = vmatprep.subr.bf16.mxu0 0
    %1029 = vmatpush1.bf16.msra.mxu0 0
    %1030 = vmatprep.subr.bf16.mxu0 0
    %1031 = vmatpush1.bf16.msra.mxu0 0
    %1032 = vmatprep.subr.bf16.mxu0 0
    %1033 = vmatpush1.bf16.msra.mxu0 0
    %1034 = vmatprep.subr.bf16.mxu0 0
    %1035 = vmatpush1.bf16.msra.mxu0 0
    %1036 = vmatprep.subr.bf16.mxu0 0
    %1037 = vmatpush1.bf16.msra.mxu0 0
    %1038 = vmatprep.subr.bf16.mxu0 0
    %1039 = vmatpush1.bf16.msra.mxu0 0
    %1040 = vmatprep.subr.bf16.mxu0 0
    %1041 = vmatpush1.bf16.msra.mxu0 0
    %1042 = vmatprep.subr.bf16.mxu0 0
    %1043 = vmatpush1.bf16.msra.mxu0 0
    %1044 = vmatprep.subr.bf16.mxu0 0
    %1045 = vmatpush1.bf16.msra.mxu0 0
    %1046 = vmatprep.subr.bf16.mxu0 0
    %1047 = vmatpush1.bf16.msra.mxu0 0
    %1048 = vmatprep.subr.bf16.mxu0 0
    %1049 = vmatpush1.bf16.msra.mxu0 0
    %1050 = vmatprep.subr.bf16.mxu0 0
    %1051 = vmatpush1.bf16.msra.mxu0 0
    %1052 = vmatprep.mubr.bf16.mxu0 0
    %1053 = vmatmul.mubr.bf16.gmra.mrb[0].mxu0 %v1018
    %v1054 = vpop.f32.mrb[0].mxu0
    %v1055 = vadd.f32 %v1004, %v1054
    %v1056 = vpop.f32.mrb[0].mxu0
    %v1057 = vpop.f32.mrb[0].mxu0
    %v1058 = vadd.f32 %v1004, %v1057
    %v1059 = vpop.f32.mrb[0].mxu0
    %1060 = vdwg.mxu0
    %v1061 = vsel %vm33, %v1055, 0.0
    %1062 = vadd.xlane.f32.xlu0 %v1061
    %v1063 = vpop.xlane.xlu0 %1062
    %v1064 = vsel %vm33, %v1058, 0.0
    %1065 = vadd.xlane.f32.xlu0 %v1064
    %v1066 = vpop.xlane.xlu0 %1065
    %v1067 = vmul.f32 %v1063, %v40
    %v1068 = vmul.f32 %v1066, %v40
    %v1069 = vsub.f32 %v1055, %v1067
    %v1070 = vsub.f32 %v1058, %v1068
    %v1071 = vmul.f32 %v1069, %v1069
    %v1072 = vmul.f32 %v1070, %v1070
    %v1073 = vsel %vm33, %v1071, 0.0
    %1074 = vadd.xlane.f32.xlu0 %v1073
    %v1075 = vpop.xlane.xlu0 %1074
    %v1076 = vsel %vm33, %v1072, 0.0
    %1077 = vadd.xlane.f32.xlu0 %v1076
    %v1078 = vpop.xlane.xlu0 %1077
    %v1079 = vmul.f32 %v1075, %v40
    %v1080 = vmul.f32 %v1078, %v40
    %v1081 = vadd.f32 %v1079, 1e-05
    %v1082 = vadd.f32 %v1080, 1e-05
    %v1083 = vrsqrt.pop %v1081
    %v1084 = vrsqrt.pop %v1082
    %v1085 = vmul.f32 %v1069, %v1083
    %v1086 = vmul.f32 %v1070, %v1084
    %v1087 = vlaneseq
    %v1088 = vshrl.u32 %v1087, 7
    %v1089 = vsub.s32 6, %v1088
    %v1090 = vrot.slane %v32, %v1089
    %v1091 = vmul.f32 %v1085, %v1090
    %v1092 = vmul.f32 %v1086, %v1090
    %v1093 = vlaneseq
    %v1094 = vshrl.u32 %v1093, 7
    %v1095 = vsub.s32 7, %v1094
    %v1096 = vrot.slane %v32, %v1095
    %v1097 = vadd.f32 %v1091, %v1096
    %v1098 = vadd.f32 %v1092, %v1096
    %v1099 = vmul.f32 %v1097, 0.5
    %v1100 = vmul.f32 %v1098, 0.5
    %v1101 = vmul.f32 %v1097, 0.044715
    %v1102 = vmul.f32 %v1098, 0.044715
    %v1103 = vmul.f32 %v1101, %v1097
    %v1104 = vmul.f32 %v1102, %v1098
    %v1105 = vmul.f32 %v1103, %v1097
    %v1106 = vmul.f32 %v1104, %v1098
    %v1107 = vadd.f32 %v1097, %v1105
    %v1108 = vadd.f32 %v1098, %v1106
    %v1109 = vmul.f32 %v1107, 0.7978846
    %v1110 = vmul.f32 %v1108, 0.7978846
    %v1111 = vtanh.pop %v1109
    %v1112 = vtanh.pop %v1110
    %v1113 = vadd.f32 %v1111, 1.0
    %v1114 = vadd.f32 %v1112, 1.0
    %v1115 = vmul.f32 %v1099, %v1113
    %v1116 = vmul.f32 %v1100, %v1114
    %v1117 = vadd.f32 %v994, %v1115
    %v1118 = vadd.f32 %v995, %v1116
    %v1119 = vadd.f32 %v1117, 0.0
    %v1120 = vadd.f32 %v1118, 0.0
    %v1121 = vadd.f32 %v16, %v1117
    %v1122 = vadd.f32 %v17, %v1118
    %v1123 = vld [vmem:[%s2 + $0x8] sm:$0xff]
    %v1124 = vsel %vm33, %v1121, 0.0
    %1125 = vadd.xlane.f32.xlu0 %v1124
    %v1126 = vpop.xlane.xlu0 %1125
    %v1127 = vsel %vm33, %v1122, 0.0
    %1128 = vadd.xlane.f32.xlu0 %v1127
    %v1129 = vpop.xlane.xlu0 %1128
    %v1130 = vmul.f32 %v1126, %v40
    %v1131 = vmul.f32 %v1129, %v40
    %v1132 = vsub.f32 %v1121, %v1130
    %v1133 = vsub.f32 %v1122, %v1131
    %v1134 = vmul.f32 %v1132, %v1132
    %v1135 = vmul.f32 %v1133, %v1133
    %v1136 = vsel %vm33, %v1134, 0.0
    %1137 = vadd.xlane.f32.xlu0 %v1136
    %v1138 = vpop.xlane.xlu0 %1137
    %v1139 = vsel %vm33, %v1135, 0.0
    %1140 = vadd.xlane.f32.xlu0 %v1139
    %v1141 = vpop.xlane.xlu0 %1140
    %v1142 = vmul.f32 %v1138, %v40
    %v1143 = vmul.f32 %v1141, %v40
    %v1144 = vadd.f32 %v1142, 1e-05
    %v1145 = vadd.f32 %v1143, 1e-05
    %v1146 = vrsqrt.pop %v1144
    %v1147 = vrsqrt.pop %v1145
    %v1148 = vmul.f32 %v1132, %v1146
    %v1149 = vmul.f32 %v1133, %v1147
    %v1150 = vlaneseq
    %v1151 = vshrl.u32 %v1150, 7
    %v1152 = vsub.s32 0, %v1151
    %v1153 = vrot.slane %v1123, %v1152
    %v1154 = vmul.f32 %v1148, %v1153
    %v1155 = vmul.f32 %v1149, %v1153
    %v1156 = vlaneseq
    %v1157 = vshrl.u32 %v1156, 7
    %v1158 = vsub.s32 1, %v1157
    %v1159 = vrot.slane %v1123, %v1158
    %v1160 = vadd.f32 %v1154, %v1159
    %v1161 = vadd.f32 %v1155, %v1159
    %v1162 = vld [vmem:[%s1 + $0x10] sm:$0xf]
    %v1163 = vld [vmem:[%s1 + $0x14] sm:$0xf]
    %v1164 = vld [vmem:[%s1 + $0x18] sm:$0xf]
    %v1165 = vld [vmem:[%s1 + $0x1c] sm:$0xf]
    %v1166 = vpack.c.bf16 %v1161, %v1160
    %v1167 = vlaneseq
    %v1168 = vshrl.u32 %v1167, 7
    %v1169 = vsub.s32 2, %v1168
    %v1170 = vrot.slane %v1123, %v1169
    %v1175 = vunpack.c.l.b16 %v1162
    %v1176 = vunpack.c.l.b16 %v1163
    %v1177 = vunpack.c.l.b16 %v1164
    %v1178 = vunpack.c.l.b16 %v1165
    %v1179 = vpack.c.b16 %v1176, %v1175
    %v1180 = vpack.c.b16 %v1178, %v1177
    %v1184 = vsel %vm33, %v1166, 0
    %1186 = vmatprep.subr.bf16.mxu0 0
    %1187 = vmatpush1.bf16.msra.mxu0 %v1179
    %1188 = vmatprep.subr.bf16.mxu0 0
    %1189 = vmatpush1.bf16.msra.mxu0 %v1180
    %1190 = vmatprep.subr.bf16.mxu0 0
    %1191 = vmatpush1.bf16.msra.mxu0 0
    %1192 = vmatprep.subr.bf16.mxu0 0
    %1193 = vmatpush1.bf16.msra.mxu0 0
    %1194 = vmatprep.subr.bf16.mxu0 0
    %1195 = vmatpush1.bf16.msra.mxu0 0
    %1196 = vmatprep.subr.bf16.mxu0 0
    %1197 = vmatpush1.bf16.msra.mxu0 0
    %1198 = vmatprep.subr.bf16.mxu0 0
    %1199 = vmatpush1.bf16.msra.mxu0 0
    %1200 = vmatprep.subr.bf16.mxu0 0
    %1201 = vmatpush1.bf16.msra.mxu0 0
    %1202 = vmatprep.subr.bf16.mxu0 0
    %1203 = vmatpush1.bf16.msra.mxu0 0
    %1204 = vmatprep.subr.bf16.mxu0 0
    %1205 = vmatpush1.bf16.msra.mxu0 0
    %1206 = vmatprep.subr.bf16.mxu0 0
    %1207 = vmatpush1.bf16.msra.mxu0 0
    %1208 = vmatprep.subr.bf16.mxu0 0
    %1209 = vmatpush1.bf16.msra.mxu0 0
    %1210 = vmatprep.subr.bf16.mxu0 0
    %1211 = vmatpush1.bf16.msra.mxu0 0
    %1212 = vmatprep.subr.bf16.mxu0 0
    %1213 = vmatpush1.bf16.msra.mxu0 0
    %1214 = vmatprep.subr.bf16.mxu0 0
    %1215 = vmatpush1.bf16.msra.mxu0 0
    %1216 = vmatprep.subr.bf16.mxu0 0
    %1217 = vmatpush1.bf16.msra.mxu0 0
    %1218 = vmatprep.mubr.bf16.mxu0 0
    %1219 = vmatmul.mubr.bf16.gmra.mrb[0].mxu0 %v1184
    %v1220 = vpop.f32.mrb[0].mxu0
    %v1221 = vadd.f32 %v1170, %v1220
    %v1222 = vpop.f32.mrb[0].mxu0
    %v1223 = vpop.f32.mrb[0].mxu0
    %v1224 = vadd.f32 %v1170, %v1223
    %v1225 = vpop.f32.mrb[0].mxu0
    %1226 = vdwg.mxu0
    %v1227 = vsel %vm139, %v1221, 0.0
    %v1228 = vsel %vm139, %v1224, 0.0
    %v1229 = vsel %vm143, %v1221, 0.0
    %v1230 = vsel %vm143, %v1224, 0.0
    %v1231 = vsel %vm147, %v1221, 0.0
    %v1232 = vsel %vm147, %v1224, 0.0
    %v1233 = vsel %vm151, %v1221, 0.0
    %v1234 = vsel %vm151, %v1224, 0.0
    %v1235 = vpack.c.bf16 %v1227, %v1227
    %v1236 = vpack.c.bf16 %v1228, %v1228
    %v1237 = vpack.c.bf16 %v1229, %v1229
    %v1238 = vpack.c.bf16 %v1230, %v1230
    %v1239 = vpack.c.bf16 %v1231, %v1231
    %v1240 = vpack.c.bf16 %v1232, %v1232
    %v1241 = vpack.c.bf16 %v1233, %v1233
    %v1242 = vpack.c.bf16 %v1234, %v1234
    %v1244 = vsel %vm33, %v1235, 0
    %1246 = vmatprep.subr.bf16.mxu0 0
    %1247 = vmatpush1.bf16.xpose.msra.mxu0 %v1244
    %1248 = vmatprep.subr.bf16.mxu0 0
    %1249 = vmatpush1.bf16.xpose.msra.mxu0 0
    %1250 = vmatprep.subr.bf16.mxu0 0
    %1251 = vmatpush1.bf16.xpose.msra.mxu0 0
    %1252 = vmatprep.subr.bf16.mxu0 0
    %1253 = vmatpush1.bf16.xpose.msra.mxu0 0
    %1254 = vmatprep.subr.bf16.mxu0 0
    %1255 = vmatpush1.bf16.xpose.msra.mxu0 0
    %1256 = vmatprep.subr.bf16.mxu0 0
    %1257 = vmatpush1.bf16.xpose.msra.mxu0 0
    %1258 = vmatprep.subr.bf16.mxu0 0
    %1259 = vmatpush1.bf16.xpose.msra.mxu0 0
    %1260 = vmatprep.subr.bf16.mxu0 0
    %1261 = vmatpush1.bf16.xpose.msra.mxu0 0
    %1262 = vmatprep.subr.bf16.mxu0 0
    %1263 = vmatpush1.bf16.xpose.msra.mxu0 0
    %1264 = vmatprep.subr.bf16.mxu0 0
    %1265 = vmatpush1.bf16.xpose.msra.mxu0 0
    %1266 = vmatprep.subr.bf16.mxu0 0
    %1267 = vmatpush1.bf16.xpose.msra.mxu0 0
    %1268 = vmatprep.subr.bf16.mxu0 0
    %1269 = vmatpush1.bf16.xpose.msra.mxu0 0
    %1270 = vmatprep.subr.bf16.mxu0 0
    %1271 = vmatpush1.bf16.xpose.msra.mxu0 0
    %1272 = vmatprep.subr.bf16.mxu0 0
    %1273 = vmatpush1.bf16.xpose.msra.mxu0 0
    %1274 = vmatprep.subr.bf16.mxu0 0
    %1275 = vmatpush1.bf16.xpose.msra.mxu0 0
    %1276 = vmatprep.subr.bf16.mxu0 0
    %1277 = vmatpush1.bf16.xpose.msra.mxu0 0
    %1278 = vmatprep.mubr.bf16.mxu0 0
    %1279 = vmatmul.mubr.bf16.gmra.mrb[0].mxu0 %v1244
    %v1280 = vpop.f32.mrb[0].mxu0
    %v1281 = vadd.f32 0.0, %v1280
    %v1282 = vpop.f32.mrb[0].mxu0
    %v1283 = vpop.f32.mrb[0].mxu0
    %v1284 = vpop.f32.mrb[0].mxu0
    %1285 = vdwg.mxu0
    %v1287 = vsel %vm33, %v1236, 0
    %1289 = vmatprep.subr.bf16.mxu0 0
    %1290 = vmatpush1.bf16.xpose.msra.mxu0 %v1287
    %1291 = vmatprep.subr.bf16.mxu0 0
    %1292 = vmatpush1.bf16.xpose.msra.mxu0 0
    %1293 = vmatprep.subr.bf16.mxu0 0
    %1294 = vmatpush1.bf16.xpose.msra.mxu0 0
    %1295 = vmatprep.subr.bf16.mxu0 0
    %1296 = vmatpush1.bf16.xpose.msra.mxu0 0
    %1297 = vmatprep.subr.bf16.mxu0 0
    %1298 = vmatpush1.bf16.xpose.msra.mxu0 0
    %1299 = vmatprep.subr.bf16.mxu0 0
    %1300 = vmatpush1.bf16.xpose.msra.mxu0 0
    %1301 = vmatprep.subr.bf16.mxu0 0
    %1302 = vmatpush1.bf16.xpose.msra.mxu0 0
    %1303 = vmatprep.subr.bf16.mxu0 0
    %1304 = vmatpush1.bf16.xpose.msra.mxu0 0
    %1305 = vmatprep.subr.bf16.mxu0 0
    %1306 = vmatpush1.bf16.xpose.msra.mxu0 0
    %1307 = vmatprep.subr.bf16.mxu0 0
    %1308 = vmatpush1.bf16.xpose.msra.mxu0 0
    %1309 = vmatprep.subr.bf16.mxu0 0
    %1310 = vmatpush1.bf16.xpose.msra.mxu0 0
    %1311 = vmatprep.subr.bf16.mxu0 0
    %1312 = vmatpush1.bf16.xpose.msra.mxu0 0
    %1313 = vmatprep.subr.bf16.mxu0 0
    %1314 = vmatpush1.bf16.xpose.msra.mxu0 0
    %1315 = vmatprep.subr.bf16.mxu0 0
    %1316 = vmatpush1.bf16.xpose.msra.mxu0 0
    %1317 = vmatprep.subr.bf16.mxu0 0
    %1318 = vmatpush1.bf16.xpose.msra.mxu0 0
    %1319 = vmatprep.subr.bf16.mxu0 0
    %1320 = vmatpush1.bf16.xpose.msra.mxu0 0
    %1321 = vmatprep.mubr.bf16.mxu0 0
    %1322 = vmatmul.mubr.bf16.gmra.mrb[0].mxu0 %v1287
    %v1323 = vpop.f32.mrb[0].mxu0
    %v1324 = vadd.f32 0.0, %v1323
    %v1325 = vpop.f32.mrb[0].mxu0
    %v1326 = vpop.f32.mrb[0].mxu0
    %v1327 = vpop.f32.mrb[0].mxu0
    %1328 = vdwg.mxu0
    %v1330 = vsel %vm33, %v1237, 0
    %1332 = vmatprep.subr.bf16.mxu0 0
    %1333 = vmatpush1.bf16.xpose.msra.mxu0 %v1330
    %1334 = vmatprep.subr.bf16.mxu0 0
    %1335 = vmatpush1.bf16.xpose.msra.mxu0 0
    %1336 = vmatprep.subr.bf16.mxu0 0
    %1337 = vmatpush1.bf16.xpose.msra.mxu0 0
    %1338 = vmatprep.subr.bf16.mxu0 0
    %1339 = vmatpush1.bf16.xpose.msra.mxu0 0
    %1340 = vmatprep.subr.bf16.mxu0 0
    %1341 = vmatpush1.bf16.xpose.msra.mxu0 0
    %1342 = vmatprep.subr.bf16.mxu0 0
    %1343 = vmatpush1.bf16.xpose.msra.mxu0 0
    %1344 = vmatprep.subr.bf16.mxu0 0
    %1345 = vmatpush1.bf16.xpose.msra.mxu0 0
    %1346 = vmatprep.subr.bf16.mxu0 0
    %1347 = vmatpush1.bf16.xpose.msra.mxu0 0
    %1348 = vmatprep.subr.bf16.mxu0 0
    %1349 = vmatpush1.bf16.xpose.msra.mxu0 0
    %1350 = vmatprep.subr.bf16.mxu0 0
    %1351 = vmatpush1.bf16.xpose.msra.mxu0 0
    %1352 = vmatprep.subr.bf16.mxu0 0
    %1353 = vmatpush1.bf16.xpose.msra.mxu0 0
    %1354 = vmatprep.subr.bf16.mxu0 0
    %1355 = vmatpush1.bf16.xpose.msra.mxu0 0
    %1356 = vmatprep.subr.bf16.mxu0 0
    %1357 = vmatpush1.bf16.xpose.msra.mxu0 0
    %1358 = vmatprep.subr.bf16.mxu0 0
    %1359 = vmatpush1.bf16.xpose.msra.mxu0 0
    %1360 = vmatprep.subr.bf16.mxu0 0
    %1361 = vmatpush1.bf16.xpose.msra.mxu0 0
    %1362 = vmatprep.subr.bf16.mxu0 0
    %1363 = vmatpush1.bf16.xpose.msra.mxu0 0
    %1364 = vmatprep.mubr.bf16.mxu0 0
    %1365 = vmatmul.mubr.bf16.gmra.mrb[0].mxu0 %v1330
    %v1366 = vpop.f32.mrb[0].mxu0
    %v1367 = vadd.f32 0.0, %v1366
    %v1368 = vpop.f32.mrb[0].mxu0
    %v1369 = vpop.f32.mrb[0].mxu0
    %v1370 = vpop.f32.mrb[0].mxu0
    %1371 = vdwg.mxu0
    %v1373 = vsel %vm33, %v1238, 0
    %1375 = vmatprep.subr.bf16.mxu0 0
    %1376 = vmatpush1.bf16.xpose.msra.mxu0 %v1373
    %1377 = vmatprep.subr.bf16.mxu0 0
    %1378 = vmatpush1.bf16.xpose.msra.mxu0 0
    %1379 = vmatprep.subr.bf16.mxu0 0
    %1380 = vmatpush1.bf16.xpose.msra.mxu0 0
    %1381 = vmatprep.subr.bf16.mxu0 0
    %1382 = vmatpush1.bf16.xpose.msra.mxu0 0
    %1383 = vmatprep.subr.bf16.mxu0 0
    %1384 = vmatpush1.bf16.xpose.msra.mxu0 0
    %1385 = vmatprep.subr.bf16.mxu0 0
    %1386 = vmatpush1.bf16.xpose.msra.mxu0 0
    %1387 = vmatprep.subr.bf16.mxu0 0
    %1388 = vmatpush1.bf16.xpose.msra.mxu0 0
    %1389 = vmatprep.subr.bf16.mxu0 0
    %1390 = vmatpush1.bf16.xpose.msra.mxu0 0
    %1391 = vmatprep.subr.bf16.mxu0 0
    %1392 = vmatpush1.bf16.xpose.msra.mxu0 0
    %1393 = vmatprep.subr.bf16.mxu0 0
    %1394 = vmatpush1.bf16.xpose.msra.mxu0 0
    %1395 = vmatprep.subr.bf16.mxu0 0
    %1396 = vmatpush1.bf16.xpose.msra.mxu0 0
    %1397 = vmatprep.subr.bf16.mxu0 0
    %1398 = vmatpush1.bf16.xpose.msra.mxu0 0
    %1399 = vmatprep.subr.bf16.mxu0 0
    %1400 = vmatpush1.bf16.xpose.msra.mxu0 0
    %1401 = vmatprep.subr.bf16.mxu0 0
    %1402 = vmatpush1.bf16.xpose.msra.mxu0 0
    %1403 = vmatprep.subr.bf16.mxu0 0
    %1404 = vmatpush1.bf16.xpose.msra.mxu0 0
    %1405 = vmatprep.subr.bf16.mxu0 0
    %1406 = vmatpush1.bf16.xpose.msra.mxu0 0
    %1407 = vmatprep.mubr.bf16.mxu0 0
    %1408 = vmatmul.mubr.bf16.gmra.mrb[0].mxu0 %v1373
    %v1409 = vpop.f32.mrb[0].mxu0
    %v1410 = vadd.f32 0.0, %v1409
    %v1411 = vpop.f32.mrb[0].mxu0
    %v1412 = vpop.f32.mrb[0].mxu0
    %v1413 = vpop.f32.mrb[0].mxu0
    %1414 = vdwg.mxu0
    %v1416 = vsel %vm33, %v1239, 0
    %1418 = vmatprep.subr.bf16.mxu0 0
    %1419 = vmatpush1.bf16.xpose.msra.mxu0 %v1416
    %1420 = vmatprep.subr.bf16.mxu0 0
    %1421 = vmatpush1.bf16.xpose.msra.mxu0 0
    %1422 = vmatprep.subr.bf16.mxu0 0
    %1423 = vmatpush1.bf16.xpose.msra.mxu0 0
    %1424 = vmatprep.subr.bf16.mxu0 0
    %1425 = vmatpush1.bf16.xpose.msra.mxu0 0
    %1426 = vmatprep.subr.bf16.mxu0 0
    %1427 = vmatpush1.bf16.xpose.msra.mxu0 0
    %1428 = vmatprep.subr.bf16.mxu0 0
    %1429 = vmatpush1.bf16.xpose.msra.mxu0 0
    %1430 = vmatprep.subr.bf16.mxu0 0
    %1431 = vmatpush1.bf16.xpose.msra.mxu0 0
    %1432 = vmatprep.subr.bf16.mxu0 0
    %1433 = vmatpush1.bf16.xpose.msra.mxu0 0
    %1434 = vmatprep.subr.bf16.mxu0 0
    %1435 = vmatpush1.bf16.xpose.msra.mxu0 0
    %1436 = vmatprep.subr.bf16.mxu0 0
    %1437 = vmatpush1.bf16.xpose.msra.mxu0 0
    %1438 = vmatprep.subr.bf16.mxu0 0
    %1439 = vmatpush1.bf16.xpose.msra.mxu0 0
    %1440 = vmatprep.subr.bf16.mxu0 0
    %1441 = vmatpush1.bf16.xpose.msra.mxu0 0
    %1442 = vmatprep.subr.bf16.mxu0 0
    %1443 = vmatpush1.bf16.xpose.msra.mxu0 0
    %1444 = vmatprep.subr.bf16.mxu0 0
    %1445 = vmatpush1.bf16.xpose.msra.mxu0 0
    %1446 = vmatprep.subr.bf16.mxu0 0
    %1447 = vmatpush1.bf16.xpose.msra.mxu0 0
    %1448 = vmatprep.subr.bf16.mxu0 0
    %1449 = vmatpush1.bf16.xpose.msra.mxu0 0
    %1450 = vmatprep.mubr.bf16.mxu0 0
    %1451 = vmatmul.mubr.bf16.gmra.mrb[0].mxu0 %v1416
    %v1452 = vpop.f32.mrb[0].mxu0
    %v1453 = vadd.f32 0.0, %v1452
    %v1454 = vpop.f32.mrb[0].mxu0
    %v1455 = vpop.f32.mrb[0].mxu0
    %v1456 = vpop.f32.mrb[0].mxu0
    %1457 = vdwg.mxu0
    %v1459 = vsel %vm33, %v1240, 0
    %1461 = vmatprep.subr.bf16.mxu0 0
    %1462 = vmatpush1.bf16.xpose.msra.mxu0 %v1459
    %1463 = vmatprep.subr.bf16.mxu0 0
    %1464 = vmatpush1.bf16.xpose.msra.mxu0 0
    %1465 = vmatprep.subr.bf16.mxu0 0
    %1466 = vmatpush1.bf16.xpose.msra.mxu0 0
    %1467 = vmatprep.subr.bf16.mxu0 0
    %1468 = vmatpush1.bf16.xpose.msra.mxu0 0
    %1469 = vmatprep.subr.bf16.mxu0 0
    %1470 = vmatpush1.bf16.xpose.msra.mxu0 0
    %1471 = vmatprep.subr.bf16.mxu0 0
    %1472 = vmatpush1.bf16.xpose.msra.mxu0 0
    %1473 = vmatprep.subr.bf16.mxu0 0
    %1474 = vmatpush1.bf16.xpose.msra.mxu0 0
    %1475 = vmatprep.subr.bf16.mxu0 0
    %1476 = vmatpush1.bf16.xpose.msra.mxu0 0
    %1477 = vmatprep.subr.bf16.mxu0 0
    %1478 = vmatpush1.bf16.xpose.msra.mxu0 0
    %1479 = vmatprep.subr.bf16.mxu0 0
    %1480 = vmatpush1.bf16.xpose.msra.mxu0 0
    %1481 = vmatprep.subr.bf16.mxu0 0
    %1482 = vmatpush1.bf16.xpose.msra.mxu0 0
    %1483 = vmatprep.subr.bf16.mxu0 0
    %1484 = vmatpush1.bf16.xpose.msra.mxu0 0
    %1485 = vmatprep.subr.bf16.mxu0 0
    %1486 = vmatpush1.bf16.xpose.msra.mxu0 0
    %1487 = vmatprep.subr.bf16.mxu0 0
    %1488 = vmatpush1.bf16.xpose.msra.mxu0 0
    %1489 = vmatprep.subr.bf16.mxu0 0
    %1490 = vmatpush1.bf16.xpose.msra.mxu0 0
    %1491 = vmatprep.subr.bf16.mxu0 0
    %1492 = vmatpush1.bf16.xpose.msra.mxu0 0
    %1493 = vmatprep.mubr.bf16.mxu0 0
    %1494 = vmatmul.mubr.bf16.gmra.mrb[0].mxu0 %v1459
    %v1495 = vpop.f32.mrb[0].mxu0
    %v1496 = vadd.f32 0.0, %v1495
    %v1497 = vpop.f32.mrb[0].mxu0
    %v1498 = vpop.f32.mrb[0].mxu0
    %v1499 = vpop.f32.mrb[0].mxu0
    %1500 = vdwg.mxu0
    %v1502 = vsel %vm33, %v1241, 0
    %1504 = vmatprep.subr.bf16.mxu0 0
    %1505 = vmatpush1.bf16.xpose.msra.mxu0 %v1502
    %1506 = vmatprep.subr.bf16.mxu0 0
    %1507 = vmatpush1.bf16.xpose.msra.mxu0 0
    %1508 = vmatprep.subr.bf16.mxu0 0
    %1509 = vmatpush1.bf16.xpose.msra.mxu0 0
    %1510 = vmatprep.subr.bf16.mxu0 0
    %1511 = vmatpush1.bf16.xpose.msra.mxu0 0
    %1512 = vmatprep.subr.bf16.mxu0 0
    %1513 = vmatpush1.bf16.xpose.msra.mxu0 0
    %1514 = vmatprep.subr.bf16.mxu0 0
    %1515 = vmatpush1.bf16.xpose.msra.mxu0 0
    %1516 = vmatprep.subr.bf16.mxu0 0
    %1517 = vmatpush1.bf16.xpose.msra.mxu0 0
    %1518 = vmatprep.subr.bf16.mxu0 0
    %1519 = vmatpush1.bf16.xpose.msra.mxu0 0
    %1520 = vmatprep.subr.bf16.mxu0 0
    %1521 = vmatpush1.bf16.xpose.msra.mxu0 0
    %1522 = vmatprep.subr.bf16.mxu0 0
    %1523 = vmatpush1.bf16.xpose.msra.mxu0 0
    %1524 = vmatprep.subr.bf16.mxu0 0
    %1525 = vmatpush1.bf16.xpose.msra.mxu0 0
    %1526 = vmatprep.subr.bf16.mxu0 0
    %1527 = vmatpush1.bf16.xpose.msra.mxu0 0
    %1528 = vmatprep.subr.bf16.mxu0 0
    %1529 = vmatpush1.bf16.xpose.msra.mxu0 0
    %1530 = vmatprep.subr.bf16.mxu0 0
    %1531 = vmatpush1.bf16.xpose.msra.mxu0 0
    %1532 = vmatprep.subr.bf16.mxu0 0
    %1533 = vmatpush1.bf16.xpose.msra.mxu0 0
    %1534 = vmatprep.subr.bf16.mxu0 0
    %1535 = vmatpush1.bf16.xpose.msra.mxu0 0
    %1536 = vmatprep.mubr.bf16.mxu0 0
    %1537 = vmatmul.mubr.bf16.gmra.mrb[0].mxu0 %v1502
    %v1538 = vpop.f32.mrb[0].mxu0
    %v1539 = vadd.f32 0.0, %v1538
    %v1540 = vpop.f32.mrb[0].mxu0
    %v1541 = vpop.f32.mrb[0].mxu0
    %v1542 = vpop.f32.mrb[0].mxu0
    %1543 = vdwg.mxu0
    %v1545 = vsel %vm33, %v1242, 0
    %1547 = vmatprep.subr.bf16.mxu0 0
    %1548 = vmatpush1.bf16.xpose.msra.mxu0 %v1545
    %1549 = vmatprep.subr.bf16.mxu0 0
    %1550 = vmatpush1.bf16.xpose.msra.mxu0 0
    %1551 = vmatprep.subr.bf16.mxu0 0
    %1552 = vmatpush1.bf16.xpose.msra.mxu0 0
    %1553 = vmatprep.subr.bf16.mxu0 0
    %1554 = vmatpush1.bf16.xpose.msra.mxu0 0
    %1555 = vmatprep.subr.bf16.mxu0 0
    %1556 = vmatpush1.bf16.xpose.msra.mxu0 0
    %1557 = vmatprep.subr.bf16.mxu0 0
    %1558 = vmatpush1.bf16.xpose.msra.mxu0 0
    %1559 = vmatprep.subr.bf16.mxu0 0
    %1560 = vmatpush1.bf16.xpose.msra.mxu0 0
    %1561 = vmatprep.subr.bf16.mxu0 0
    %1562 = vmatpush1.bf16.xpose.msra.mxu0 0
    %1563 = vmatprep.subr.bf16.mxu0 0
    %1564 = vmatpush1.bf16.xpose.msra.mxu0 0
    %1565 = vmatprep.subr.bf16.mxu0 0
    %1566 = vmatpush1.bf16.xpose.msra.mxu0 0
    %1567 = vmatprep.subr.bf16.mxu0 0
    %1568 = vmatpush1.bf16.xpose.msra.mxu0 0
    %1569 = vmatprep.subr.bf16.mxu0 0
    %1570 = vmatpush1.bf16.xpose.msra.mxu0 0
    %1571 = vmatprep.subr.bf16.mxu0 0
    %1572 = vmatpush1.bf16.xpose.msra.mxu0 0
    %1573 = vmatprep.subr.bf16.mxu0 0
    %1574 = vmatpush1.bf16.xpose.msra.mxu0 0
    %1575 = vmatprep.subr.bf16.mxu0 0
    %1576 = vmatpush1.bf16.xpose.msra.mxu0 0
    %1577 = vmatprep.subr.bf16.mxu0 0
    %1578 = vmatpush1.bf16.xpose.msra.mxu0 0
    %1579 = vmatprep.mubr.bf16.mxu0 0
    %1580 = vmatmul.mubr.bf16.gmra.mrb[0].mxu0 %v1545
    %v1581 = vpop.f32.mrb[0].mxu0
    %v1582 = vadd.f32 0.0, %v1581
    %v1583 = vpop.f32.mrb[0].mxu0
    %v1584 = vpop.f32.mrb[0].mxu0
    %v1585 = vpop.f32.mrb[0].mxu0
    %1586 = vdwg.mxu0
    %v1587 = vmul.f32 %v1281, 1.442695
    %v1588 = vpow.pop %v1587
    %v1589 = vmul.f32 %v1324, 1.442695
    %v1590 = vpow.pop %v1589
    %v1591 = vmul.f32 %v1367, 1.442695
    %v1592 = vpow.pop %v1591
    %v1593 = vmul.f32 %v1410, 1.442695
    %v1594 = vpow.pop %v1593
    %v1595 = vmul.f32 %v1453, 1.442695
    %v1596 = vpow.pop %v1595
    %v1597 = vmul.f32 %v1496, 1.442695
    %v1598 = vpow.pop %v1597
    %v1599 = vmul.f32 %v1539, 1.442695
    %v1600 = vpow.pop %v1599
    %v1601 = vmul.f32 %v1582, 1.442695
    %v1602 = vpow.pop %v1601
    %v1603 = vsel %vm522, %v1588, 0.0
    %1604 = vadd.xlane.f32.xlu0 %v1603
    %v1605 = vpop.xlane.xlu0 %1604
    %v1606 = vsel %vm522, %v1590, 0.0
    %1607 = vadd.xlane.f32.xlu0 %v1606
    %v1608 = vpop.xlane.xlu0 %1607
    %v1609 = vsel %vm522, %v1592, 0.0
    %1610 = vadd.xlane.f32.xlu0 %v1609
    %v1611 = vpop.xlane.xlu0 %1610
    %v1612 = vsel %vm522, %v1594, 0.0
    %1613 = vadd.xlane.f32.xlu0 %v1612
    %v1614 = vpop.xlane.xlu0 %1613
    %v1615 = vsel %vm522, %v1596, 0.0
    %1616 = vadd.xlane.f32.xlu0 %v1615
    %v1617 = vpop.xlane.xlu0 %1616
    %v1618 = vsel %vm522, %v1598, 0.0
    %1619 = vadd.xlane.f32.xlu0 %v1618
    %v1620 = vpop.xlane.xlu0 %1619
    %v1621 = vsel %vm522, %v1600, 0.0
    %1622 = vadd.xlane.f32.xlu0 %v1621
    %v1623 = vpop.xlane.xlu0 %1622
    %v1624 = vsel %vm522, %v1602, 0.0
    %1625 = vadd.xlane.f32.xlu0 %v1624
    %v1626 = vpop.xlane.xlu0 %1625
    %v1627 = vrcp.pop %v1605
    %v1628 = vmul.f32 %v1588, %v1627
    %v1629 = vrcp.pop %v1608
    %v1630 = vmul.f32 %v1590, %v1629
    %v1631 = vrcp.pop %v1611
    %v1632 = vmul.f32 %v1592, %v1631
    %v1633 = vrcp.pop %v1614
    %v1634 = vmul.f32 %v1594, %v1633
    %v1635 = vrcp.pop %v1617
    %v1636 = vmul.f32 %v1596, %v1635
    %v1637 = vrcp.pop %v1620
    %v1638 = vmul.f32 %v1598, %v1637
    %v1639 = vrcp.pop %v1623
    %v1640 = vmul.f32 %v1600, %v1639
    %v1641 = vrcp.pop %v1626
    %v1642 = vmul.f32 %v1602, %v1641
    %v1643 = vpack.c.bf16 %v1628, %v1628
    %v1644 = vpack.c.bf16 %v1630, %v1630
    %v1645 = vpack.c.bf16 %v1632, %v1632
    %v1646 = vpack.c.bf16 %v1634, %v1634
    %v1647 = vpack.c.bf16 %v1636, %v1636
    %v1648 = vpack.c.bf16 %v1638, %v1638
    %v1649 = vpack.c.bf16 %v1640, %v1640
    %v1650 = vpack.c.bf16 %v1642, %v1642
    %v1652 = vsel %vm522, %v1643, 0
    %v1654 = vsel %vm574, %v1235, 0
    %1656 = vmatprep.subr.bf16.mxu0 0
    %1657 = vmatpush1.bf16.msra.mxu0 %v1654
    %1658 = vmatprep.subr.bf16.mxu0 0
    %1659 = vmatpush1.bf16.msra.mxu0 0
    %1660 = vmatprep.subr.bf16.mxu0 0
    %1661 = vmatpush1.bf16.msra.mxu0 0
    %1662 = vmatprep.subr.bf16.mxu0 0
    %1663 = vmatpush1.bf16.msra.mxu0 0
    %1664 = vmatprep.subr.bf16.mxu0 0
    %1665 = vmatpush1.bf16.msra.mxu0 0
    %1666 = vmatprep.subr.bf16.mxu0 0
    %1667 = vmatpush1.bf16.msra.mxu0 0
    %1668 = vmatprep.subr.bf16.mxu0 0
    %1669 = vmatpush1.bf16.msra.mxu0 0
    %1670 = vmatprep.subr.bf16.mxu0 0
    %1671 = vmatpush1.bf16.msra.mxu0 0
    %1672 = vmatprep.subr.bf16.mxu0 0
    %1673 = vmatpush1.bf16.msra.mxu0 0
    %1674 = vmatprep.subr.bf16.mxu0 0
    %1675 = vmatpush1.bf16.msra.mxu0 0
    %1676 = vmatprep.subr.bf16.mxu0 0
    %1677 = vmatpush1.bf16.msra.mxu0 0
    %1678 = vmatprep.subr.bf16.mxu0 0
    %1679 = vmatpush1.bf16.msra.mxu0 0
    %1680 = vmatprep.subr.bf16.mxu0 0
    %1681 = vmatpush1.bf16.msra.mxu0 0
    %1682 = vmatprep.subr.bf16.mxu0 0
    %1683 = vmatpush1.bf16.msra.mxu0 0
    %1684 = vmatprep.subr.bf16.mxu0 0
    %1685 = vmatpush1.bf16.msra.mxu0 0
    %1686 = vmatprep.subr.bf16.mxu0 0
    %1687 = vmatpush1.bf16.msra.mxu0 0
    %1688 = vmatprep.mubr.bf16.mxu0 0
    %1689 = vmatmul.mubr.bf16.gmra.mrb[0].mxu0 %v1652
    %v1690 = vpop.f32.mrb[0].mxu0
    %v1691 = vadd.f32 0.0, %v1690
    %v1692 = vpop.f32.mrb[0].mxu0
    %v1693 = vpop.f32.mrb[0].mxu0
    %v1694 = vpop.f32.mrb[0].mxu0
    %1695 = vdwg.mxu0
    %v1697 = vsel %vm522, %v1644, 0
    %v1699 = vsel %vm574, %v1236, 0
    %1701 = vmatprep.subr.bf16.mxu0 0
    %1702 = vmatpush1.bf16.msra.mxu0 %v1699
    %1703 = vmatprep.subr.bf16.mxu0 0
    %1704 = vmatpush1.bf16.msra.mxu0 0
    %1705 = vmatprep.subr.bf16.mxu0 0
    %1706 = vmatpush1.bf16.msra.mxu0 0
    %1707 = vmatprep.subr.bf16.mxu0 0
    %1708 = vmatpush1.bf16.msra.mxu0 0
    %1709 = vmatprep.subr.bf16.mxu0 0
    %1710 = vmatpush1.bf16.msra.mxu0 0
    %1711 = vmatprep.subr.bf16.mxu0 0
    %1712 = vmatpush1.bf16.msra.mxu0 0
    %1713 = vmatprep.subr.bf16.mxu0 0
    %1714 = vmatpush1.bf16.msra.mxu0 0
    %1715 = vmatprep.subr.bf16.mxu0 0
    %1716 = vmatpush1.bf16.msra.mxu0 0
    %1717 = vmatprep.subr.bf16.mxu0 0
    %1718 = vmatpush1.bf16.msra.mxu0 0
    %1719 = vmatprep.subr.bf16.mxu0 0
    %1720 = vmatpush1.bf16.msra.mxu0 0
    %1721 = vmatprep.subr.bf16.mxu0 0
    %1722 = vmatpush1.bf16.msra.mxu0 0
    %1723 = vmatprep.subr.bf16.mxu0 0
    %1724 = vmatpush1.bf16.msra.mxu0 0
    %1725 = vmatprep.subr.bf16.mxu0 0
    %1726 = vmatpush1.bf16.msra.mxu0 0
    %1727 = vmatprep.subr.bf16.mxu0 0
    %1728 = vmatpush1.bf16.msra.mxu0 0
    %1729 = vmatprep.subr.bf16.mxu0 0
    %1730 = vmatpush1.bf16.msra.mxu0 0
    %1731 = vmatprep.subr.bf16.mxu0 0
    %1732 = vmatpush1.bf16.msra.mxu0 0
    %1733 = vmatprep.mubr.bf16.mxu0 0
    %1734 = vmatmul.mubr.bf16.gmra.mrb[0].mxu0 %v1697
    %v1735 = vpop.f32.mrb[0].mxu0
    %v1736 = vadd.f32 0.0, %v1735
    %v1737 = vpop.f32.mrb[0].mxu0
    %v1738 = vpop.f32.mrb[0].mxu0
    %v1739 = vpop.f32.mrb[0].mxu0
    %1740 = vdwg.mxu0
    %v1742 = vsel %vm522, %v1645, 0
    %v1744 = vsel %vm574, %v1237, 0
    %1746 = vmatprep.subr.bf16.mxu0 0
    %1747 = vmatpush1.bf16.msra.mxu0 %v1744
    %1748 = vmatprep.subr.bf16.mxu0 0
    %1749 = vmatpush1.bf16.msra.mxu0 0
    %1750 = vmatprep.subr.bf16.mxu0 0
    %1751 = vmatpush1.bf16.msra.mxu0 0
    %1752 = vmatprep.subr.bf16.mxu0 0
    %1753 = vmatpush1.bf16.msra.mxu0 0
    %1754 = vmatprep.subr.bf16.mxu0 0
    %1755 = vmatpush1.bf16.msra.mxu0 0
    %1756 = vmatprep.subr.bf16.mxu0 0
    %1757 = vmatpush1.bf16.msra.mxu0 0
    %1758 = vmatprep.subr.bf16.mxu0 0
    %1759 = vmatpush1.bf16.msra.mxu0 0
    %1760 = vmatprep.subr.bf16.mxu0 0
    %1761 = vmatpush1.bf16.msra.mxu0 0
    %1762 = vmatprep.subr.bf16.mxu0 0
    %1763 = vmatpush1.bf16.msra.mxu0 0
    %1764 = vmatprep.subr.bf16.mxu0 0
    %1765 = vmatpush1.bf16.msra.mxu0 0
    %1766 = vmatprep.subr.bf16.mxu0 0
    %1767 = vmatpush1.bf16.msra.mxu0 0
    %1768 = vmatprep.subr.bf16.mxu0 0
    %1769 = vmatpush1.bf16.msra.mxu0 0
    %1770 = vmatprep.subr.bf16.mxu0 0
    %1771 = vmatpush1.bf16.msra.mxu0 0
    %1772 = vmatprep.subr.bf16.mxu0 0
    %1773 = vmatpush1.bf16.msra.mxu0 0
    %1774 = vmatprep.subr.bf16.mxu0 0
    %1775 = vmatpush1.bf16.msra.mxu0 0
    %1776 = vmatprep.subr.bf16.mxu0 0
    %1777 = vmatpush1.bf16.msra.mxu0 0
    %1778 = vmatprep.mubr.bf16.mxu0 0
    %1779 = vmatmul.mubr.bf16.gmra.mrb[0].mxu0 %v1742
    %v1780 = vpop.f32.mrb[0].mxu0
    %v1781 = vadd.f32 0.0, %v1780
    %v1782 = vpop.f32.mrb[0].mxu0
    %v1783 = vpop.f32.mrb[0].mxu0
    %v1784 = vpop.f32.mrb[0].mxu0
    %1785 = vdwg.mxu0
    %v1787 = vsel %vm522, %v1646, 0
    %v1789 = vsel %vm574, %v1238, 0
    %1791 = vmatprep.subr.bf16.mxu0 0
    %1792 = vmatpush1.bf16.msra.mxu0 %v1789
    %1793 = vmatprep.subr.bf16.mxu0 0
    %1794 = vmatpush1.bf16.msra.mxu0 0
    %1795 = vmatprep.subr.bf16.mxu0 0
    %1796 = vmatpush1.bf16.msra.mxu0 0
    %1797 = vmatprep.subr.bf16.mxu0 0
    %1798 = vmatpush1.bf16.msra.mxu0 0
    %1799 = vmatprep.subr.bf16.mxu0 0
    %1800 = vmatpush1.bf16.msra.mxu0 0
    %1801 = vmatprep.subr.bf16.mxu0 0
    %1802 = vmatpush1.bf16.msra.mxu0 0
    %1803 = vmatprep.subr.bf16.mxu0 0
    %1804 = vmatpush1.bf16.msra.mxu0 0
    %1805 = vmatprep.subr.bf16.mxu0 0
    %1806 = vmatpush1.bf16.msra.mxu0 0
    %1807 = vmatprep.subr.bf16.mxu0 0
    %1808 = vmatpush1.bf16.msra.mxu0 0
    %1809 = vmatprep.subr.bf16.mxu0 0
    %1810 = vmatpush1.bf16.msra.mxu0 0
    %1811 = vmatprep.subr.bf16.mxu0 0
    %1812 = vmatpush1.bf16.msra.mxu0 0
    %1813 = vmatprep.subr.bf16.mxu0 0
    %1814 = vmatpush1.bf16.msra.mxu0 0
    %1815 = vmatprep.subr.bf16.mxu0 0
    %1816 = vmatpush1.bf16.msra.mxu0 0
    %1817 = vmatprep.subr.bf16.mxu0 0
    %1818 = vmatpush1.bf16.msra.mxu0 0
    %1819 = vmatprep.subr.bf16.mxu0 0
    %1820 = vmatpush1.bf16.msra.mxu0 0
    %1821 = vmatprep.subr.bf16.mxu0 0
    %1822 = vmatpush1.bf16.msra.mxu0 0
    %1823 = vmatprep.mubr.bf16.mxu0 0
    %1824 = vmatmul.mubr.bf16.gmra.mrb[0].mxu0 %v1787
    %v1825 = vpop.f32.mrb[0].mxu0
    %v1826 = vadd.f32 0.0, %v1825
    %v1827 = vpop.f32.mrb[0].mxu0
    %v1828 = vpop.f32.mrb[0].mxu0
    %v1829 = vpop.f32.mrb[0].mxu0
    %1830 = vdwg.mxu0
    %v1832 = vsel %vm522, %v1647, 0
    %v1834 = vsel %vm574, %v1239, 0
    %1836 = vmatprep.subr.bf16.mxu0 0
    %1837 = vmatpush1.bf16.msra.mxu0 %v1834
    %1838 = vmatprep.subr.bf16.mxu0 0
    %1839 = vmatpush1.bf16.msra.mxu0 0
    %1840 = vmatprep.subr.bf16.mxu0 0
    %1841 = vmatpush1.bf16.msra.mxu0 0
    %1842 = vmatprep.subr.bf16.mxu0 0
    %1843 = vmatpush1.bf16.msra.mxu0 0
    %1844 = vmatprep.subr.bf16.mxu0 0
    %1845 = vmatpush1.bf16.msra.mxu0 0
    %1846 = vmatprep.subr.bf16.mxu0 0
    %1847 = vmatpush1.bf16.msra.mxu0 0
    %1848 = vmatprep.subr.bf16.mxu0 0
    %1849 = vmatpush1.bf16.msra.mxu0 0
    %1850 = vmatprep.subr.bf16.mxu0 0
    %1851 = vmatpush1.bf16.msra.mxu0 0
    %1852 = vmatprep.subr.bf16.mxu0 0
    %1853 = vmatpush1.bf16.msra.mxu0 0
    %1854 = vmatprep.subr.bf16.mxu0 0
    %1855 = vmatpush1.bf16.msra.mxu0 0
    %1856 = vmatprep.subr.bf16.mxu0 0
    %1857 = vmatpush1.bf16.msra.mxu0 0
    %1858 = vmatprep.subr.bf16.mxu0 0
    %1859 = vmatpush1.bf16.msra.mxu0 0
    %1860 = vmatprep.subr.bf16.mxu0 0
    %1861 = vmatpush1.bf16.msra.mxu0 0
    %1862 = vmatprep.subr.bf16.mxu0 0
    %1863 = vmatpush1.bf16.msra.mxu0 0
    %1864 = vmatprep.subr.bf16.mxu0 0
    %1865 = vmatpush1.bf16.msra.mxu0 0
    %1866 = vmatprep.subr.bf16.mxu0 0
    %1867 = vmatpush1.bf16.msra.mxu0 0
    %1868 = vmatprep.mubr.bf16.mxu0 0
    %1869 = vmatmul.mubr.bf16.gmra.mrb[0].mxu0 %v1832
    %v1870 = vpop.f32.mrb[0].mxu0
    %v1871 = vadd.f32 0.0, %v1870
    %v1872 = vpop.f32.mrb[0].mxu0
    %v1873 = vpop.f32.mrb[0].mxu0
    %v1874 = vpop.f32.mrb[0].mxu0
    %1875 = vdwg.mxu0
    %v1877 = vsel %vm522, %v1648, 0
    %v1879 = vsel %vm574, %v1240, 0
    %1881 = vmatprep.subr.bf16.mxu0 0
    %1882 = vmatpush1.bf16.msra.mxu0 %v1879
    %1883 = vmatprep.subr.bf16.mxu0 0
    %1884 = vmatpush1.bf16.msra.mxu0 0
    %1885 = vmatprep.subr.bf16.mxu0 0
    %1886 = vmatpush1.bf16.msra.mxu0 0
    %1887 = vmatprep.subr.bf16.mxu0 0
    %1888 = vmatpush1.bf16.msra.mxu0 0
    %1889 = vmatprep.subr.bf16.mxu0 0
    %1890 = vmatpush1.bf16.msra.mxu0 0
    %1891 = vmatprep.subr.bf16.mxu0 0
    %1892 = vmatpush1.bf16.msra.mxu0 0
    %1893 = vmatprep.subr.bf16.mxu0 0
    %1894 = vmatpush1.bf16.msra.mxu0 0
    %1895 = vmatprep.subr.bf16.mxu0 0
    %1896 = vmatpush1.bf16.msra.mxu0 0
    %1897 = vmatprep.subr.bf16.mxu0 0
    %1898 = vmatpush1.bf16.msra.mxu0 0
    %1899 = vmatprep.subr.bf16.mxu0 0
    %1900 = vmatpush1.bf16.msra.mxu0 0
    %1901 = vmatprep.subr.bf16.mxu0 0
    %1902 = vmatpush1.bf16.msra.mxu0 0
    %1903 = vmatprep.subr.bf16.mxu0 0
    %1904 = vmatpush1.bf16.msra.mxu0 0
    %1905 = vmatprep.subr.bf16.mxu0 0
    %1906 = vmatpush1.bf16.msra.mxu0 0
    %1907 = vmatprep.subr.bf16.mxu0 0
    %1908 = vmatpush1.bf16.msra.mxu0 0
    %1909 = vmatprep.subr.bf16.mxu0 0
    %1910 = vmatpush1.bf16.msra.mxu0 0
    %1911 = vmatprep.subr.bf16.mxu0 0
    %1912 = vmatpush1.bf16.msra.mxu0 0
    %1913 = vmatprep.mubr.bf16.mxu0 0
    %1914 = vmatmul.mubr.bf16.gmra.mrb[0].mxu0 %v1877
    %v1915 = vpop.f32.mrb[0].mxu0
    %v1916 = vadd.f32 0.0, %v1915
    %v1917 = vpop.f32.mrb[0].mxu0
    %v1918 = vpop.f32.mrb[0].mxu0
    %v1919 = vpop.f32.mrb[0].mxu0
    %1920 = vdwg.mxu0
    %v1922 = vsel %vm522, %v1649, 0
    %v1924 = vsel %vm574, %v1241, 0
    %1926 = vmatprep.subr.bf16.mxu0 0
    %1927 = vmatpush1.bf16.msra.mxu0 %v1924
    %1928 = vmatprep.subr.bf16.mxu0 0
    %1929 = vmatpush1.bf16.msra.mxu0 0
    %1930 = vmatprep.subr.bf16.mxu0 0
    %1931 = vmatpush1.bf16.msra.mxu0 0
    %1932 = vmatprep.subr.bf16.mxu0 0
    %1933 = vmatpush1.bf16.msra.mxu0 0
    %1934 = vmatprep.subr.bf16.mxu0 0
    %1935 = vmatpush1.bf16.msra.mxu0 0
    %1936 = vmatprep.subr.bf16.mxu0 0
    %1937 = vmatpush1.bf16.msra.mxu0 0
    %1938 = vmatprep.subr.bf16.mxu0 0
    %1939 = vmatpush1.bf16.msra.mxu0 0
    %1940 = vmatprep.subr.bf16.mxu0 0
    %1941 = vmatpush1.bf16.msra.mxu0 0
    %1942 = vmatprep.subr.bf16.mxu0 0
    %1943 = vmatpush1.bf16.msra.mxu0 0
    %1944 = vmatprep.subr.bf16.mxu0 0
    %1945 = vmatpush1.bf16.msra.mxu0 0
    %1946 = vmatprep.subr.bf16.mxu0 0
    %1947 = vmatpush1.bf16.msra.mxu0 0
    %1948 = vmatprep.subr.bf16.mxu0 0
    %1949 = vmatpush1.bf16.msra.mxu0 0
    %1950 = vmatprep.subr.bf16.mxu0 0
    %1951 = vmatpush1.bf16.msra.mxu0 0
    %1952 = vmatprep.subr.bf16.mxu0 0
    %1953 = vmatpush1.bf16.msra.mxu0 0
    %1954 = vmatprep.subr.bf16.mxu0 0
    %1955 = vmatpush1.bf16.msra.mxu0 0
    %1956 = vmatprep.subr.bf16.mxu0 0
    %1957 = vmatpush1.bf16.msra.mxu0 0
    %1958 = vmatprep.mubr.bf16.mxu0 0
    %1959 = vmatmul.mubr.bf16.gmra.mrb[0].mxu0 %v1922
    %v1960 = vpop.f32.mrb[0].mxu0
    %v1961 = vadd.f32 0.0, %v1960
    %v1962 = vpop.f32.mrb[0].mxu0
    %v1963 = vpop.f32.mrb[0].mxu0
    %v1964 = vpop.f32.mrb[0].mxu0
    %1965 = vdwg.mxu0
    %v1967 = vsel %vm522, %v1650, 0
    %v1969 = vsel %vm574, %v1242, 0
    %1971 = vmatprep.subr.bf16.mxu0 0
    %1972 = vmatpush1.bf16.msra.mxu0 %v1969
    %1973 = vmatprep.subr.bf16.mxu0 0
    %1974 = vmatpush1.bf16.msra.mxu0 0
    %1975 = vmatprep.subr.bf16.mxu0 0
    %1976 = vmatpush1.bf16.msra.mxu0 0
    %1977 = vmatprep.subr.bf16.mxu0 0
    %1978 = vmatpush1.bf16.msra.mxu0 0
    %1979 = vmatprep.subr.bf16.mxu0 0
    %1980 = vmatpush1.bf16.msra.mxu0 0
    %1981 = vmatprep.subr.bf16.mxu0 0
    %1982 = vmatpush1.bf16.msra.mxu0 0
    %1983 = vmatprep.subr.bf16.mxu0 0
    %1984 = vmatpush1.bf16.msra.mxu0 0
    %1985 = vmatprep.subr.bf16.mxu0 0
    %1986 = vmatpush1.bf16.msra.mxu0 0
    %1987 = vmatprep.subr.bf16.mxu0 0
    %1988 = vmatpush1.bf16.msra.mxu0 0
    %1989 = vmatprep.subr.bf16.mxu0 0
    %1990 = vmatpush1.bf16.msra.mxu0 0
    %1991 = vmatprep.subr.bf16.mxu0 0
    %1992 = vmatpush1.bf16.msra.mxu0 0
    %1993 = vmatprep.subr.bf16.mxu0 0
    %1994 = vmatpush1.bf16.msra.mxu0 0
    %1995 = vmatprep.subr.bf16.mxu0 0
    %1996 = vmatpush1.bf16.msra.mxu0 0
    %1997 = vmatprep.subr.bf16.mxu0 0
    %1998 = vmatpush1.bf16.msra.mxu0 0
    %1999 = vmatprep.subr.bf16.mxu0 0
    %2000 = vmatpush1.bf16.msra.mxu0 0
    %2001 = vmatprep.subr.bf16.mxu0 0
    %2002 = vmatpush1.bf16.msra.mxu0 0
    %2003 = vmatprep.mubr.bf16.mxu0 0
    %2004 = vmatmul.mubr.bf16.gmra.mrb[0].mxu0 %v1967
    %v2005 = vpop.f32.mrb[0].mxu0
    %v2006 = vadd.f32 0.0, %v2005
    %v2007 = vpop.f32.mrb[0].mxu0
    %v2008 = vpop.f32.mrb[0].mxu0
    %v2009 = vpop.f32.mrb[0].mxu0
    %2010 = vdwg.mxu0
    %v2011 = vadd.f32 %v1691, %v1781
    %v2012 = vadd.f32 %v1736, %v1826
    %v2013 = vadd.f32 %v2011, %v1871
    %v2014 = vadd.f32 %v2012, %v1916
    %v2015 = vadd.f32 %v2013, %v1961
    %v2016 = vadd.f32 %v2014, %v2006
    %v2017 = vsel %vm33, %v2015, 0.0
    %2018 = vadd.xlane.f32.xlu0 %v2017
    %v2019 = vpop.xlane.xlu0 %2018
    %v2020 = vsel %vm33, %v2016, 0.0
    %2021 = vadd.xlane.f32.xlu0 %v2020
    %v2022 = vpop.xlane.xlu0 %2021
    %v2023 = vmul.f32 %v2019, %v40
    %v2024 = vmul.f32 %v2022, %v40
    %v2025 = vsub.f32 %v2015, %v2023
    %v2026 = vsub.f32 %v2016, %v2024
    %v2027 = vmul.f32 %v2025, %v2025
    %v2028 = vmul.f32 %v2026, %v2026
    %v2029 = vsel %vm33, %v2027, 0.0
    %2030 = vadd.xlane.f32.xlu0 %v2029
    %v2031 = vpop.xlane.xlu0 %2030
    %v2032 = vsel %vm33, %v2028, 0.0
    %2033 = vadd.xlane.f32.xlu0 %v2032
    %v2034 = vpop.xlane.xlu0 %2033
    %v2035 = vmul.f32 %v2031, %v40
    %v2036 = vmul.f32 %v2034, %v40
    %v2037 = vadd.f32 %v2035, 1e-05
    %v2038 = vadd.f32 %v2036, 1e-05
    %v2039 = vrsqrt.pop %v2037
    %v2040 = vrsqrt.pop %v2038
    %v2041 = vmul.f32 %v2025, %v2039
    %v2042 = vmul.f32 %v2026, %v2040
    %v2043 = vlaneseq
    %v2044 = vshrl.u32 %v2043, 7
    %v2045 = vsub.s32 3, %v2044
    %v2046 = vrot.slane %v1123, %v2045
    %v2047 = vmul.f32 %v2041, %v2046
    %v2048 = vmul.f32 %v2042, %v2046
    %v2049 = vlaneseq
    %v2050 = vshrl.u32 %v2049, 7
    %v2051 = vsub.s32 4, %v2050
    %v2052 = vrot.slane %v1123, %v2051
    %v2053 = vadd.f32 %v2047, %v2052
    %v2054 = vadd.f32 %v2048, %v2052
    %v2055 = vmul.f32 %v2053, 0.5
    %v2056 = vmul.f32 %v2054, 0.5
    %v2057 = vmul.f32 %v2053, 0.044715
    %v2058 = vmul.f32 %v2054, 0.044715
    %v2059 = vmul.f32 %v2057, %v2053
    %v2060 = vmul.f32 %v2058, %v2054
    %v2061 = vmul.f32 %v2059, %v2053
    %v2062 = vmul.f32 %v2060, %v2054
    %v2063 = vadd.f32 %v2053, %v2061
    %v2064 = vadd.f32 %v2054, %v2062
    %v2065 = vmul.f32 %v2063, 0.7978846
    %v2066 = vmul.f32 %v2064, 0.7978846
    %v2067 = vtanh.pop %v2065
    %v2068 = vtanh.pop %v2066
    %v2069 = vadd.f32 %v2067, 1.0
    %v2070 = vadd.f32 %v2068, 1.0
    %v2071 = vmul.f32 %v2055, %v2069
    %v2072 = vmul.f32 %v2056, %v2070
    %v2073 = vadd.f32 %v1160, %v2071
    %v2074 = vadd.f32 %v1161, %v2072
    %v2075 = vld [vmem:[%s1 + $0x30] sm:$0xf]
    %v2076 = vld [vmem:[%s1 + $0x34] sm:$0xf]
    %v2077 = vld [vmem:[%s1 + $0x38] sm:$0xf]
    %v2078 = vld [vmem:[%s1 + $0x3c] sm:$0xf]
    %v2079 = vpack.c.bf16 %v2074, %v2073
    %v2080 = vlaneseq
    %v2081 = vshrl.u32 %v2080, 7
    %v2082 = vsub.s32 5, %v2081
    %v2083 = vrot.slane %v1123, %v2082
    %v2088 = vunpack.c.l.b16 %v2075
    %v2089 = vunpack.c.l.b16 %v2076
    %v2090 = vunpack.c.l.b16 %v2077
    %v2091 = vunpack.c.l.b16 %v2078
    %v2092 = vpack.c.b16 %v2089, %v2088
    %v2093 = vpack.c.b16 %v2091, %v2090
    %v2097 = vsel %vm33, %v2079, 0
    %2099 = vmatprep.subr.bf16.mxu0 0
    %2100 = vmatpush1.bf16.msra.mxu0 %v2092
    %2101 = vmatprep.subr.bf16.mxu0 0
    %2102 = vmatpush1.bf16.msra.mxu0 %v2093
    %2103 = vmatprep.subr.bf16.mxu0 0
    %2104 = vmatpush1.bf16.msra.mxu0 0
    %2105 = vmatprep.subr.bf16.mxu0 0
    %2106 = vmatpush1.bf16.msra.mxu0 0
    %2107 = vmatprep.subr.bf16.mxu0 0
    %2108 = vmatpush1.bf16.msra.mxu0 0
    %2109 = vmatprep.subr.bf16.mxu0 0
    %2110 = vmatpush1.bf16.msra.mxu0 0
    %2111 = vmatprep.subr.bf16.mxu0 0
    %2112 = vmatpush1.bf16.msra.mxu0 0
    %2113 = vmatprep.subr.bf16.mxu0 0
    %2114 = vmatpush1.bf16.msra.mxu0 0
    %2115 = vmatprep.subr.bf16.mxu0 0
    %2116 = vmatpush1.bf16.msra.mxu0 0
    %2117 = vmatprep.subr.bf16.mxu0 0
    %2118 = vmatpush1.bf16.msra.mxu0 0
    %2119 = vmatprep.subr.bf16.mxu0 0
    %2120 = vmatpush1.bf16.msra.mxu0 0
    %2121 = vmatprep.subr.bf16.mxu0 0
    %2122 = vmatpush1.bf16.msra.mxu0 0
    %2123 = vmatprep.subr.bf16.mxu0 0
    %2124 = vmatpush1.bf16.msra.mxu0 0
    %2125 = vmatprep.subr.bf16.mxu0 0
    %2126 = vmatpush1.bf16.msra.mxu0 0
    %2127 = vmatprep.subr.bf16.mxu0 0
    %2128 = vmatpush1.bf16.msra.mxu0 0
    %2129 = vmatprep.subr.bf16.mxu0 0
    %2130 = vmatpush1.bf16.msra.mxu0 0
    %2131 = vmatprep.mubr.bf16.mxu0 0
    %2132 = vmatmul.mubr.bf16.gmra.mrb[0].mxu0 %v2097
    %v2133 = vpop.f32.mrb[0].mxu0
    %v2134 = vadd.f32 %v2083, %v2133
    %v2135 = vpop.f32.mrb[0].mxu0
    %v2136 = vpop.f32.mrb[0].mxu0
    %v2137 = vadd.f32 %v2083, %v2136
    %v2138 = vpop.f32.mrb[0].mxu0
    %2139 = vdwg.mxu0
    %v2140 = vsel %vm33, %v2134, 0.0
    %2141 = vadd.xlane.f32.xlu0 %v2140
    %v2142 = vpop.xlane.xlu0 %2141
    %v2143 = vsel %vm33, %v2137, 0.0
    %2144 = vadd.xlane.f32.xlu0 %v2143
    %v2145 = vpop.xlane.xlu0 %2144
    %v2146 = vmul.f32 %v2142, %v40
    %v2147 = vmul.f32 %v2145, %v40
    %v2148 = vsub.f32 %v2134, %v2146
    %v2149 = vsub.f32 %v2137, %v2147
    %v2150 = vmul.f32 %v2148, %v2148
    %v2151 = vmul.f32 %v2149, %v2149
    %v2152 = vsel %vm33, %v2150, 0.0
    %2153 = vadd.xlane.f32.xlu0 %v2152
    %v2154 = vpop.xlane.xlu0 %2153
    %v2155 = vsel %vm33, %v2151, 0.0
    %2156 = vadd.xlane.f32.xlu0 %v2155
    %v2157 = vpop.xlane.xlu0 %2156
    %v2158 = vmul.f32 %v2154, %v40
    %v2159 = vmul.f32 %v2157, %v40
    %v2160 = vadd.f32 %v2158, 1e-05
    %v2161 = vadd.f32 %v2159, 1e-05
    %v2162 = vrsqrt.pop %v2160
    %v2163 = vrsqrt.pop %v2161
    %v2164 = vmul.f32 %v2148, %v2162
    %v2165 = vmul.f32 %v2149, %v2163
    %v2166 = vlaneseq
    %v2167 = vshrl.u32 %v2166, 7
    %v2168 = vsub.s32 6, %v2167
    %v2169 = vrot.slane %v1123, %v2168
    %v2170 = vmul.f32 %v2164, %v2169
    %v2171 = vmul.f32 %v2165, %v2169
    %v2172 = vlaneseq
    %v2173 = vshrl.u32 %v2172, 7
    %v2174 = vsub.s32 7, %v2173
    %v2175 = vrot.slane %v1123, %v2174
    %v2176 = vadd.f32 %v2170, %v2175
    %v2177 = vadd.f32 %v2171, %v2175
    %v2178 = vmul.f32 %v2176, 0.5
    %v2179 = vmul.f32 %v2177, 0.5
    %v2180 = vmul.f32 %v2176, 0.044715
    %v2181 = vmul.f32 %v2177, 0.044715
    %v2182 = vmul.f32 %v2180, %v2176
    %v2183 = vmul.f32 %v2181, %v2177
    %v2184 = vmul.f32 %v2182, %v2176
    %v2185 = vmul.f32 %v2183, %v2177
    %v2186 = vadd.f32 %v2176, %v2184
    %v2187 = vadd.f32 %v2177, %v2185
    %v2188 = vmul.f32 %v2186, 0.7978846
    %v2189 = vmul.f32 %v2187, 0.7978846
    %v2190 = vtanh.pop %v2188
    %v2191 = vtanh.pop %v2189
    %v2192 = vadd.f32 %v2190, 1.0
    %v2193 = vadd.f32 %v2191, 1.0
    %v2194 = vmul.f32 %v2178, %v2192
    %v2195 = vmul.f32 %v2179, %v2193
    %v2196 = vadd.f32 %v2073, %v2194
    %v2197 = vadd.f32 %v2074, %v2195
    %v2198 = vadd.f32 %v1119, %v2196
    %v2199 = vadd.f32 %v1120, %v2197
    %2200 = vst.msk [vmem:[#allocation2] sm:$0xff] %vm33, %v2198
    %2201 = vst.msk [vmem:[#allocation2 + $0x8] sm:$0xff] %vm33, %v2199
    // Predicated region
    $region14: #{tpu_custom_call.1} parent=1 // pred_check
      _
    $region15: #{tpu_custom_call.1} parent=1 // pred_check_branch
      %2203 = sbr.rel (0) target = $region17
    $region16: #{tpu_custom_call.1} parent=1 // pred_region
      %s2205 = ssub.s32 256, 256
      %2206 = vsyncadd [#allocation3], %s2205
      %s2207 = sshll.u32 [#allocation2], 4
      %s2208 = int_to_ptr.vmem [resolvable:$true] %s2207
      %2213 = dma.vmem_to_hbm [thread:$0]  %s2208, 256, %s3, [#allocation3], 128, 128, 8
    $region17: #{tpu_custom_call.1} parent=1 // pred_fallthru
      _
    // Predicated region
    $region18: #{tpu_custom_call.1} parent=1 // pred_check
      _
    $region19: #{tpu_custom_call.1} parent=1 // pred_check_branch
      %2215 = sbr.rel (0) target = $region21
    $region20: #{tpu_custom_call.1} parent=1 // pred_region
      %2216 = dma.done [#allocation3], 256
    $region21: #{tpu_custom_call.1} parent=1 // pred_fallthru
      _
    %2217 = vsyncpa [#allocation3], 1

</llo_original>
